<compile_context>
chip_gen: v7x
topology: tpu7x:2x2x1
jax: 0.10.0
libtpu: 0.0.40
codegen_flags: <defaults>
</compile_context>

<pallas_src>
import functools

import jax
import jax.numpy as jnp
from jax.experimental import pallas as pl
from jax.experimental.pallas import tpu as pltpu


def _round_up(v, m):
    return ((v + m - 1) // m) * m


# ----------------------------- Pallas kernel ------------------------------ #

def _lstm_cell(gx, h, c, w_hh_ref, H):
    """One LSTM step.  gx = x_t @ W_ih + b (precomputed), hidden width H.

    w_hh_ref is read inside each call (cheap per-step VMEM load) instead of
    being hoisted into a Python variable across the unrolled loop.
    """
    gates = gx + jnp.dot(h, w_hh_ref[...], preferred_element_type=jnp.float32)
    # PyTorch gate order: i, f, g, o — compact H-wide lane slices.
    i = jax.nn.sigmoid(gates[:, 0 * H:1 * H])
    f = jax.nn.sigmoid(gates[:, 1 * H:2 * H])
    g = jnp.tanh(gates[:, 2 * H:3 * H])
    o = jax.nn.sigmoid(gates[:, 3 * H:4 * H])
    c = f * c + i * g
    h = o * jnp.tanh(c)
    return h, c


def _encoder_kernel(x_ref, w1x_ref, w1h_ref, b1_ref, w2x_ref, w2h_ref, b2_ref,
                    out_ref, *, seq_len, batch):
    # x_ref  : (T*B, Fp)   time-major input, features zero-padded to Fp lanes
    # w1x_ref: (Fp, 4*H1)  rnn1 input->gates (transposed, compact gates)
    # w1h_ref: (H1, 4*H1)  rnn1 hidden->gates
    # b1_ref : (1, 4*H1)   rnn1 combined bias
    # w2x_ref: (H1, 4*H2)  rnn2 input->gates
    # w2h_ref: (H2, 4*H2)  rnn2 hidden->gates
    # b2_ref : (1, 4*H2)   rnn2 combined bias
    # out_ref: (1, H2)     rnn2 final hidden state
    T, B = seq_len, batch
    H1 = w1h_ref.shape[0]
    H2 = w2h_ref.shape[0]

    # ---- fused rnn1 input projection (off the serial recurrence path) ----
    gx1 = (jnp.dot(x_ref[...], w1x_ref[...],
                   preferred_element_type=jnp.float32)
           + b1_ref[...])                                  # (T*B, 4*H1)

    # ---- rnn1: recurrence over T timesteps, batch B -----------------------
    h1 = jnp.zeros((B, H1), jnp.float32)
    c1 = jnp.zeros((B, H1), jnp.float32)
    for t in range(T):                                     # static, unrolled
        h1, c1 = _lstm_cell(gx1[t * B:(t + 1) * B, :], h1, c1, w1h_ref, H1)

    # ---- rnn2: h1 is read as a length-B sequence with batch size 1 --------
    # Hoisted rnn2 input projection: one matmul, off the serial path.
    gx2 = (jnp.dot(h1, w2x_ref[...], preferred_element_type=jnp.float32)
           + b2_ref[...])                                  # (B, 4*H2)
    h2 = jnp.zeros((1, H2), jnp.float32)
    c2 = jnp.zeros((1, H2), jnp.float32)
    for s in range(B):                                     # static, unrolled
        h2, c2 = _lstm_cell(gx2[s:s + 1, :], h2, c2, w2h_ref, H2)

    out_ref[...] = h2


def _encoder_pallas_call(x_tm, w1x, w1h, b1, w2x, w2h, b2, *, seq_len, batch):
    H2 = w2h.shape[0]
    kernel = functools.partial(_encoder_kernel, seq_len=seq_len, batch=batch)
    # Entire problem (<1 MiB) fits in VMEM -> gridless call, full-array blocks.
    return pl.pallas_call(
        kernel,
        out_shape=jax.ShapeDtypeStruct((1, H2), jnp.float32),
        in_specs=[pl.BlockSpec(memory_space=pltpu.MemorySpace.VMEM)
                  for _ in range(7)],
        out_specs=pl.BlockSpec(memory_space=pltpu.MemorySpace.VMEM),
    )(x_tm, w1x, w1h, b1, w2x, w2h, b2)


# --------------------------- Parameter handling ---------------------------- #

def init_lstm_params(key, input_size, hidden_size):
    """Deterministic init matching nn.LSTM parameter shapes (uniform(-k, k))."""
    k = 1.0 / jnp.sqrt(jnp.float32(hidden_size))
    k1, k2, k3, k4 = jax.random.split(key, 4)
    w_ih = jax.random.uniform(k1, (4 * hidden_size, input_size),
                              minval=-k, maxval=k, dtype=jnp.float32)
    w_hh = jax.random.uniform(k2, (4 * hidden_size, hidden_size),
                              minval=-k, maxval=k, dtype=jnp.float32)
    b_ih = jax.random.uniform(k3, (4 * hidden_size,),
                              minval=-k, maxval=k, dtype=jnp.float32)
    b_hh = jax.random.uniform(k4, (4 * hidden_size,),
                              minval=-k, maxval=k, dtype=jnp.float32)
    return w_ih, w_hh, b_ih, b_hh


def _pad_gate_cols(w, H, Hp):
    """(rows, 4*H) -> (rows, 4*Hp): gate block k placed at columns [k*Hp, k*Hp+H)."""
    if Hp == H:
        return w
    out = jnp.zeros((w.shape[0], 4 * Hp), w.dtype)
    for k in range(4):
        out = out.at[:, k * Hp:k * Hp + H].set(w[:, k * H:(k + 1) * H])
    return out


def _pad_rows(w, rows):
    if w.shape[0] == rows:
        return w
    return jnp.concatenate(
        [w, jnp.zeros((rows - w.shape[0], w.shape[1]), w.dtype)], axis=0)


def pack_lstm_params(params, input_rows=None):
    """PyTorch-layout LSTM params -> kernel layout (transposed, compact gates).

    Hidden width H is padded to Hp = roundup(H, 32) so the total gate width
    4*Hp is a 128-lane multiple.  Returns (w_ih_p, w_hh_p, b_p, Hp):
      w_ih_p (R, 4*Hp) with R = input_rows (default: natural input size),
      w_hh_p (Hp, 4*Hp), b_p (1, 4*Hp) = b_ih + b_hh.
    """
    w_ih, w_hh, b_ih, b_hh = params
    H = w_hh.shape[1]
    Hp = _round_up(H, 32)
    w_ih_p = _pad_gate_cols(w_ih.T, H, Hp)                     # (F, 4*Hp)
    if input_rows is not None:
        w_ih_p = _pad_rows(w_ih_p, input_rows)
    w_hh_p = _pad_rows(_pad_gate_cols(w_hh.T, H, Hp), Hp)      # (Hp, 4*Hp)
    b_p = _pad_gate_cols((b_ih + b_hh)[None, :], H, Hp)        # (1, 4*Hp)
    return w_ih_p, w_hh_p, b_p, Hp


# ------------------------------ Encoder fwd -------------------------------- #

def encoder_forward(x, packed1, packed2, seq_len, n_features, embedding_dim):
    """Forward pass of Encoder; returns (1, embedding_dim) like the PyTorch module."""
    w1x, w1h, b1 = packed1
    w2x, w2h, b2 = packed2
    Fp = w1x.shape[0]
    x = x.reshape((-1, seq_len, n_features)).astype(jnp.float32)     # (B, T, F)
    B = x.shape[0]
    # Layout-only prep (fuses into one tiny XLA copy): time-major, flatten,
    # zero-pad the feature axis to Fp lanes.  The projection itself happens
    # inside the fused Pallas kernel.
    x_tm = jnp.transpose(x, (1, 0, 2)).reshape(seq_len * B, n_features)
    x_tm = jnp.pad(x_tm, ((0, 0), (0, Fp - n_features)))             # (T*B, Fp)
    out = _encoder_pallas_call(x_tm, w1x, w1h, b1, w2x, w2h, b2,
                               seq_len=seq_len, batch=B)             # (1, Hp2)
    return out[:, :embedding_dim].reshape((-1, embedding_dim))


# --------------------------- Pure-JAX reference ---------------------------- #

def _lstm_ref(x_btf, w_ih, w_hh, b_ih, b_hh):
    B, T, F = x_btf.shape
    H = w_hh.shape[1]
    hp = jax.lax.Precision.HIGHEST

    def step(carry, x_t):
        h, c = carry
        gates = (jnp.dot(x_t, w_ih.T, precision=hp)
                 + jnp.dot(h, w_hh.T, precision=hp) + b_ih + b_hh)
        i = jax.nn.sigmoid(gates[:, 0 * H:1 * H])
        f = jax.nn.sigmoid(gates[:, 1 * H:2 * H])
        g = jnp.tanh(gates[:, 2 * H:3 * H])
        o = jax.nn.sigmoid(gates[:, 3 * H:4 * H])
        c = f * c + i * g
        h = o * jnp.tanh(c)
        return (h, c), None

    init = (jnp.zeros((B, H), jnp.float32), jnp.zeros((B, H), jnp.float32))
    (h, _), _ = jax.lax.scan(step, init, jnp.transpose(x_btf, (1, 0, 2)))
    return h


# ----------------------------------- main ---------------------------------- #

if __name__ == "__main__":
    seq_len, n_features, embedding_dim = 8, 4, 32
    hidden_dim = 2 * embedding_dim
    batch = 2

    key = jax.random.PRNGKey(0)
    kx, kr1, kr2 = jax.random.split(key, 3)
    x = jax.random.normal(kx, (batch, seq_len, n_features), dtype=jnp.float32)

    p1 = init_lstm_params(kr1, n_features, hidden_dim)
    p2 = init_lstm_params(kr2, hidden_dim, embedding_dim)

    # rnn1 input rows padded to 128 lanes (keeps the fused x-projection matmul
    # on a full, well-aligned contraction); rnn2 input rows = rnn1 hidden width.
    w1x, w1h, b1, Hp1 = pack_lstm_params(p1, input_rows=128)
    w2x, w2h, b2, Hp2 = pack_lstm_params(p2, input_rows=Hp1)
    packed1 = (w1x, w1h, b1)
    packed2 = (w2x, w2h, b2)

    fwd = jax.jit(functools.partial(
        encoder_forward, packed1=packed1, packed2=packed2,
        seq_len=seq_len, n_features=n_features, embedding_dim=embedding_dim))
    out = jax.block_until_ready(fwd(x))

    # sanity check vs. a pure-JAX reference of the exact PyTorch semantics
    h1_ref = _lstm_ref(x, *p1)                   # rnn1 hidden_n[0]: (B, hidden_dim)
    h2_ref = _lstm_ref(h1_ref[None, :, :], *p2)  # rnn2 reads it as (batch=1, seq=B)
    ref = h2_ref.reshape((-1, embedding_dim))

    assert out.shape == (1, embedding_dim), out.shape
    assert jnp.allclose(out, ref, atol=1e-4, rtol=1e-4), (
        float(jnp.max(jnp.abs(out - ref))))
    print("KERNEL_OK")
</pallas_src>

<mosaic_0001>
module attributes {stable_mosaic.version = 11 : i64} {
  func.func @_encoder_kernel(%arg0: memref<16x128xf32, #tpu.memory_space<vmem>>, %arg1: memref<128x256xf32, #tpu.memory_space<vmem>>, %arg2: memref<64x256xf32, #tpu.memory_space<vmem>>, %arg3: memref<1x256xf32, #tpu.memory_space<vmem>>, %arg4: memref<64x128xf32, #tpu.memory_space<vmem>>, %arg5: memref<32x128xf32, #tpu.memory_space<vmem>>, %arg6: memref<1x128xf32, #tpu.memory_space<vmem>>, %arg7: memref<1x32xf32, #tpu.memory_space<vmem>>) attributes {dimension_semantics = [], scalar_prefetch = 0 : i64, scratch_operands = 0 : i64, tpu.core_type = #tpu.core_type<tc>} {
    %c0 = arith.constant 0 : index
    %c0_0 = arith.constant 0 : index
    %0 = vector.load %arg0[%c0, %c0_0] : memref<16x128xf32, #tpu.memory_space<vmem>>, vector<16x128xf32>
    %c0_1 = arith.constant 0 : index
    %c0_2 = arith.constant 0 : index
    %1 = vector.load %arg1[%c0_1, %c0_2] : memref<128x256xf32, #tpu.memory_space<vmem>>, vector<128x256xf32>
    %cst = arith.constant dense<0.000000e+00> : vector<16x256xf32>
    %2 = tpu.matmul %0, %1, %cst {dimension_numbers = #tpu.dot_dimension_numbers<[1], [0], [0], [1], [0, 0, 1, 1], [], []>} : vector<16x128xf32>, vector<128x256xf32>, vector<16x256xf32> -> vector<16x256xf32>
    %c0_3 = arith.constant 0 : index
    %c0_4 = arith.constant 0 : index
    %3 = vector.load %arg3[%c0_3, %c0_4] : memref<1x256xf32, #tpu.memory_space<vmem>>, vector<1x256xf32>
    %4 = vector.broadcast %3 : vector<1x256xf32> to vector<16x256xf32>
    %5 = arith.addf %2, %4 : vector<16x256xf32>
    %cst_5 = arith.constant 0.000000e+00 : f32
    %6 = vector.broadcast %cst_5 : f32 to vector<2x64xf32>
    %cst_6 = arith.constant 0.000000e+00 : f32
    %7 = vector.broadcast %cst_6 : f32 to vector<2x64xf32>
    %8 = vector.extract_strided_slice %5 {offsets = [0, 0], sizes = [2, 256], strides = [1, 1]} : vector<16x256xf32> to vector<2x256xf32>
    %c0_7 = arith.constant 0 : index
    %c0_8 = arith.constant 0 : index
    %9 = vector.load %arg2[%c0_7, %c0_8] : memref<64x256xf32, #tpu.memory_space<vmem>>, vector<64x256xf32>
    %cst_9 = arith.constant dense<0.000000e+00> : vector<2x256xf32>
    %10 = tpu.matmul %6, %9, %cst_9 {dimension_numbers = #tpu.dot_dimension_numbers<[1], [0], [0], [1], [0, 0, 1, 1], [], []>} : vector<2x64xf32>, vector<64x256xf32>, vector<2x256xf32> -> vector<2x256xf32>
    %11 = arith.addf %8, %10 : vector<2x256xf32>
    %12 = vector.extract_strided_slice %11 {offsets = [0, 0], sizes = [2, 64], strides = [1, 1]} : vector<2x256xf32> to vector<2x64xf32>
    %13 = arith.negf %12 : vector<2x64xf32>
    %14 = math.exp %13 : vector<2x64xf32>
    %cst_10 = arith.constant 1.000000e+00 : f32
    %15 = vector.broadcast %cst_10 : f32 to vector<2x64xf32>
    %16 = arith.addf %15, %14 : vector<2x64xf32>
    %17 = arith.divf %15, %16 : vector<2x64xf32>
    %18 = vector.extract_strided_slice %11 {offsets = [0, 64], sizes = [2, 64], strides = [1, 1]} : vector<2x256xf32> to vector<2x64xf32>
    %19 = arith.negf %18 : vector<2x64xf32>
    %20 = math.exp %19 : vector<2x64xf32>
    %cst_11 = arith.constant 1.000000e+00 : f32
    %21 = vector.broadcast %cst_11 : f32 to vector<2x64xf32>
    %22 = arith.addf %21, %20 : vector<2x64xf32>
    %23 = arith.divf %21, %22 : vector<2x64xf32>
    %24 = vector.extract_strided_slice %11 {offsets = [0, 128], sizes = [2, 64], strides = [1, 1]} : vector<2x256xf32> to vector<2x64xf32>
    %25 = math.tanh %24 : vector<2x64xf32>
    %26 = vector.extract_strided_slice %11 {offsets = [0, 192], sizes = [2, 64], strides = [1, 1]} : vector<2x256xf32> to vector<2x64xf32>
    %27 = arith.negf %26 : vector<2x64xf32>
    %28 = math.exp %27 : vector<2x64xf32>
    %cst_12 = arith.constant 1.000000e+00 : f32
    %29 = vector.broadcast %cst_12 : f32 to vector<2x64xf32>
    %30 = arith.addf %29, %28 : vector<2x64xf32>
    %31 = arith.divf %29, %30 : vector<2x64xf32>
    %32 = arith.mulf %23, %7 : vector<2x64xf32>
    %33 = arith.mulf %17, %25 : vector<2x64xf32>
    %34 = arith.addf %32, %33 : vector<2x64xf32>
    %35 = math.tanh %34 : vector<2x64xf32>
    %36 = arith.mulf %31, %35 : vector<2x64xf32>
    %37 = vector.extract_strided_slice %5 {offsets = [2, 0], sizes = [2, 256], strides = [1, 1]} : vector<16x256xf32> to vector<2x256xf32>
    %c0_13 = arith.constant 0 : index
    %c0_14 = arith.constant 0 : index
    %38 = vector.load %arg2[%c0_13, %c0_14] : memref<64x256xf32, #tpu.memory_space<vmem>>, vector<64x256xf32>
    %cst_15 = arith.constant dense<0.000000e+00> : vector<2x256xf32>
    %39 = tpu.matmul %36, %38, %cst_15 {dimension_numbers = #tpu.dot_dimension_numbers<[1], [0], [0], [1], [0, 0, 1, 1], [], []>} : vector<2x64xf32>, vector<64x256xf32>, vector<2x256xf32> -> vector<2x256xf32>
    %40 = arith.addf %37, %39 : vector<2x256xf32>
    %41 = vector.extract_strided_slice %40 {offsets = [0, 0], sizes = [2, 64], strides = [1, 1]} : vector<2x256xf32> to vector<2x64xf32>
    %42 = arith.negf %41 : vector<2x64xf32>
    %43 = math.exp %42 : vector<2x64xf32>
    %cst_16 = arith.constant 1.000000e+00 : f32
    %44 = vector.broadcast %cst_16 : f32 to vector<2x64xf32>
    %45 = arith.addf %44, %43 : vector<2x64xf32>
    %46 = arith.divf %44, %45 : vector<2x64xf32>
    %47 = vector.extract_strided_slice %40 {offsets = [0, 64], sizes = [2, 64], strides = [1, 1]} : vector<2x256xf32> to vector<2x64xf32>
    %48 = arith.negf %47 : vector<2x64xf32>
    %49 = math.exp %48 : vector<2x64xf32>
    %cst_17 = arith.constant 1.000000e+00 : f32
    %50 = vector.broadcast %cst_17 : f32 to vector<2x64xf32>
    %51 = arith.addf %50, %49 : vector<2x64xf32>
    %52 = arith.divf %50, %51 : vector<2x64xf32>
    %53 = vector.extract_strided_slice %40 {offsets = [0, 128], sizes = [2, 64], strides = [1, 1]} : vector<2x256xf32> to vector<2x64xf32>
    %54 = math.tanh %53 : vector<2x64xf32>
    %55 = vector.extract_strided_slice %40 {offsets = [0, 192], sizes = [2, 64], strides = [1, 1]} : vector<2x256xf32> to vector<2x64xf32>
    %56 = arith.negf %55 : vector<2x64xf32>
    %57 = math.exp %56 : vector<2x64xf32>
    %cst_18 = arith.constant 1.000000e+00 : f32
    %58 = vector.broadcast %cst_18 : f32 to vector<2x64xf32>
    %59 = arith.addf %58, %57 : vector<2x64xf32>
    %60 = arith.divf %58, %59 : vector<2x64xf32>
    %61 = arith.mulf %52, %34 : vector<2x64xf32>
    %62 = arith.mulf %46, %54 : vector<2x64xf32>
    %63 = arith.addf %61, %62 : vector<2x64xf32>
    %64 = math.tanh %63 : vector<2x64xf32>
    %65 = arith.mulf %60, %64 : vector<2x64xf32>
    %66 = vector.extract_strided_slice %5 {offsets = [4, 0], sizes = [2, 256], strides = [1, 1]} : vector<16x256xf32> to vector<2x256xf32>
    %c0_19 = arith.constant 0 : index
    %c0_20 = arith.constant 0 : index
    %67 = vector.load %arg2[%c0_19, %c0_20] : memref<64x256xf32, #tpu.memory_space<vmem>>, vector<64x256xf32>
    %cst_21 = arith.constant dense<0.000000e+00> : vector<2x256xf32>
    %68 = tpu.matmul %65, %67, %cst_21 {dimension_numbers = #tpu.dot_dimension_numbers<[1], [0], [0], [1], [0, 0, 1, 1], [], []>} : vector<2x64xf32>, vector<64x256xf32>, vector<2x256xf32> -> vector<2x256xf32>
    %69 = arith.addf %66, %68 : vector<2x256xf32>
    %70 = vector.extract_strided_slice %69 {offsets = [0, 0], sizes = [2, 64], strides = [1, 1]} : vector<2x256xf32> to vector<2x64xf32>
    %71 = arith.negf %70 : vector<2x64xf32>
    %72 = math.exp %71 : vector<2x64xf32>
    %cst_22 = arith.constant 1.000000e+00 : f32
    %73 = vector.broadcast %cst_22 : f32 to vector<2x64xf32>
    %74 = arith.addf %73, %72 : vector<2x64xf32>
    %75 = arith.divf %73, %74 : vector<2x64xf32>
    %76 = vector.extract_strided_slice %69 {offsets = [0, 64], sizes = [2, 64], strides = [1, 1]} : vector<2x256xf32> to vector<2x64xf32>
    %77 = arith.negf %76 : vector<2x64xf32>
    %78 = math.exp %77 : vector<2x64xf32>
    %cst_23 = arith.constant 1.000000e+00 : f32
    %79 = vector.broadcast %cst_23 : f32 to vector<2x64xf32>
    %80 = arith.addf %79, %78 : vector<2x64xf32>
    %81 = arith.divf %79, %80 : vector<2x64xf32>
    %82 = vector.extract_strided_slice %69 {offsets = [0, 128], sizes = [2, 64], strides = [1, 1]} : vector<2x256xf32> to vector<2x64xf32>
    %83 = math.tanh %82 : vector<2x64xf32>
    %84 = vector.extract_strided_slice %69 {offsets = [0, 192], sizes = [2, 64], strides = [1, 1]} : vector<2x256xf32> to vector<2x64xf32>
    %85 = arith.negf %84 : vector<2x64xf32>
    %86 = math.exp %85 : vector<2x64xf32>
    %cst_24 = arith.constant 1.000000e+00 : f32
    %87 = vector.broadcast %cst_24 : f32 to vector<2x64xf32>
    %88 = arith.addf %87, %86 : vector<2x64xf32>
    %89 = arith.divf %87, %88 : vector<2x64xf32>
    %90 = arith.mulf %81, %63 : vector<2x64xf32>
    %91 = arith.mulf %75, %83 : vector<2x64xf32>
    %92 = arith.addf %90, %91 : vector<2x64xf32>
    %93 = math.tanh %92 : vector<2x64xf32>
    %94 = arith.mulf %89, %93 : vector<2x64xf32>
    %95 = vector.extract_strided_slice %5 {offsets = [6, 0], sizes = [2, 256], strides = [1, 1]} : vector<16x256xf32> to vector<2x256xf32>
    %c0_25 = arith.constant 0 : index
    %c0_26 = arith.constant 0 : index
    %96 = vector.load %arg2[%c0_25, %c0_26] : memref<64x256xf32, #tpu.memory_space<vmem>>, vector<64x256xf32>
    %cst_27 = arith.constant dense<0.000000e+00> : vector<2x256xf32>
    %97 = tpu.matmul %94, %96, %cst_27 {dimension_numbers = #tpu.dot_dimension_numbers<[1], [0], [0], [1], [0, 0, 1, 1], [], []>} : vector<2x64xf32>, vector<64x256xf32>, vector<2x256xf32> -> vector<2x256xf32>
    %98 = arith.addf %95, %97 : vector<2x256xf32>
    %99 = vector.extract_strided_slice %98 {offsets = [0, 0], sizes = [2, 64], strides = [1, 1]} : vector<2x256xf32> to vector<2x64xf32>
    %100 = arith.negf %99 : vector<2x64xf32>
    %101 = math.exp %100 : vector<2x64xf32>
    %cst_28 = arith.constant 1.000000e+00 : f32
    %102 = vector.broadcast %cst_28 : f32 to vector<2x64xf32>
    %103 = arith.addf %102, %101 : vector<2x64xf32>
    %104 = arith.divf %102, %103 : vector<2x64xf32>
    %105 = vector.extract_strided_slice %98 {offsets = [0, 64], sizes = [2, 64], strides = [1, 1]} : vector<2x256xf32> to vector<2x64xf32>
    %106 = arith.negf %105 : vector<2x64xf32>
    %107 = math.exp %106 : vector<2x64xf32>
    %cst_29 = arith.constant 1.000000e+00 : f32
    %108 = vector.broadcast %cst_29 : f32 to vector<2x64xf32>
    %109 = arith.addf %108, %107 : vector<2x64xf32>
    %110 = arith.divf %108, %109 : vector<2x64xf32>
    %111 = vector.extract_strided_slice %98 {offsets = [0, 128], sizes = [2, 64], strides = [1, 1]} : vector<2x256xf32> to vector<2x64xf32>
    %112 = math.tanh %111 : vector<2x64xf32>
    %113 = vector.extract_strided_slice %98 {offsets = [0, 192], sizes = [2, 64], strides = [1, 1]} : vector<2x256xf32> to vector<2x64xf32>
    %114 = arith.negf %113 : vector<2x64xf32>
    %115 = math.exp %114 : vector<2x64xf32>
    %cst_30 = arith.constant 1.000000e+00 : f32
    %116 = vector.broadcast %cst_30 : f32 to vector<2x64xf32>
    %117 = arith.addf %116, %115 : vector<2x64xf32>
    %118 = arith.divf %116, %117 : vector<2x64xf32>
    %119 = arith.mulf %110, %92 : vector<2x64xf32>
    %120 = arith.mulf %104, %112 : vector<2x64xf32>
    %121 = arith.addf %119, %120 : vector<2x64xf32>
    %122 = math.tanh %121 : vector<2x64xf32>
    %123 = arith.mulf %118, %122 : vector<2x64xf32>
    %124 = vector.extract_strided_slice %5 {offsets = [8, 0], sizes = [2, 256], strides = [1, 1]} : vector<16x256xf32> to vector<2x256xf32>
    %c0_31 = arith.constant 0 : index
    %c0_32 = arith.constant 0 : index
    %125 = vector.load %arg2[%c0_31, %c0_32] : memref<64x256xf32, #tpu.memory_space<vmem>>, vector<64x256xf32>
    %cst_33 = arith.constant dense<0.000000e+00> : vector<2x256xf32>
    %126 = tpu.matmul %123, %125, %cst_33 {dimension_numbers = #tpu.dot_dimension_numbers<[1], [0], [0], [1], [0, 0, 1, 1], [], []>} : vector<2x64xf32>, vector<64x256xf32>, vector<2x256xf32> -> vector<2x256xf32>
    %127 = arith.addf %124, %126 : vector<2x256xf32>
    %128 = vector.extract_strided_slice %127 {offsets = [0, 0], sizes = [2, 64], strides = [1, 1]} : vector<2x256xf32> to vector<2x64xf32>
    %129 = arith.negf %128 : vector<2x64xf32>
    %130 = math.exp %129 : vector<2x64xf32>
    %cst_34 = arith.constant 1.000000e+00 : f32
    %131 = vector.broadcast %cst_34 : f32 to vector<2x64xf32>
    %132 = arith.addf %131, %130 : vector<2x64xf32>
    %133 = arith.divf %131, %132 : vector<2x64xf32>
    %134 = vector.extract_strided_slice %127 {offsets = [0, 64], sizes = [2, 64], strides = [1, 1]} : vector<2x256xf32> to vector<2x64xf32>
    %135 = arith.negf %134 : vector<2x64xf32>
    %136 = math.exp %135 : vector<2x64xf32>
    %cst_35 = arith.constant 1.000000e+00 : f32
    %137 = vector.broadcast %cst_35 : f32 to vector<2x64xf32>
    %138 = arith.addf %137, %136 : vector<2x64xf32>
    %139 = arith.divf %137, %138 : vector<2x64xf32>
    %140 = vector.extract_strided_slice %127 {offsets = [0, 128], sizes = [2, 64], strides = [1, 1]} : vector<2x256xf32> to vector<2x64xf32>
    %141 = math.tanh %140 : vector<2x64xf32>
    %142 = vector.extract_strided_slice %127 {offsets = [0, 192], sizes = [2, 64], strides = [1, 1]} : vector<2x256xf32> to vector<2x64xf32>
    %143 = arith.negf %142 : vector<2x64xf32>
    %144 = math.exp %143 : vector<2x64xf32>
    %cst_36 = arith.constant 1.000000e+00 : f32
    %145 = vector.broadcast %cst_36 : f32 to vector<2x64xf32>
    %146 = arith.addf %145, %144 : vector<2x64xf32>
    %147 = arith.divf %145, %146 : vector<2x64xf32>
    %148 = arith.mulf %139, %121 : vector<2x64xf32>
    %149 = arith.mulf %133, %141 : vector<2x64xf32>
    %150 = arith.addf %148, %149 : vector<2x64xf32>
    %151 = math.tanh %150 : vector<2x64xf32>
    %152 = arith.mulf %147, %151 : vector<2x64xf32>
    %153 = vector.extract_strided_slice %5 {offsets = [10, 0], sizes = [2, 256], strides = [1, 1]} : vector<16x256xf32> to vector<2x256xf32>
    %c0_37 = arith.constant 0 : index
    %c0_38 = arith.constant 0 : index
    %154 = vector.load %arg2[%c0_37, %c0_38] : memref<64x256xf32, #tpu.memory_space<vmem>>, vector<64x256xf32>
    %cst_39 = arith.constant dense<0.000000e+00> : vector<2x256xf32>
    %155 = tpu.matmul %152, %154, %cst_39 {dimension_numbers = #tpu.dot_dimension_numbers<[1], [0], [0], [1], [0, 0, 1, 1], [], []>} : vector<2x64xf32>, vector<64x256xf32>, vector<2x256xf32> -> vector<2x256xf32>
    %156 = arith.addf %153, %155 : vector<2x256xf32>
    %157 = vector.extract_strided_slice %156 {offsets = [0, 0], sizes = [2, 64], strides = [1, 1]} : vector<2x256xf32> to vector<2x64xf32>
    %158 = arith.negf %157 : vector<2x64xf32>
    %159 = math.exp %158 : vector<2x64xf32>
    %cst_40 = arith.constant 1.000000e+00 : f32
    %160 = vector.broadcast %cst_40 : f32 to vector<2x64xf32>
    %161 = arith.addf %160, %159 : vector<2x64xf32>
    %162 = arith.divf %160, %161 : vector<2x64xf32>
    %163 = vector.extract_strided_slice %156 {offsets = [0, 64], sizes = [2, 64], strides = [1, 1]} : vector<2x256xf32> to vector<2x64xf32>
    %164 = arith.negf %163 : vector<2x64xf32>
    %165 = math.exp %164 : vector<2x64xf32>
    %cst_41 = arith.constant 1.000000e+00 : f32
    %166 = vector.broadcast %cst_41 : f32 to vector<2x64xf32>
    %167 = arith.addf %166, %165 : vector<2x64xf32>
    %168 = arith.divf %166, %167 : vector<2x64xf32>
    %169 = vector.extract_strided_slice %156 {offsets = [0, 128], sizes = [2, 64], strides = [1, 1]} : vector<2x256xf32> to vector<2x64xf32>
    %170 = math.tanh %169 : vector<2x64xf32>
    %171 = vector.extract_strided_slice %156 {offsets = [0, 192], sizes = [2, 64], strides = [1, 1]} : vector<2x256xf32> to vector<2x64xf32>
    %172 = arith.negf %171 : vector<2x64xf32>
    %173 = math.exp %172 : vector<2x64xf32>
    %cst_42 = arith.constant 1.000000e+00 : f32
    %174 = vector.broadcast %cst_42 : f32 to vector<2x64xf32>
    %175 = arith.addf %174, %173 : vector<2x64xf32>
    %176 = arith.divf %174, %175 : vector<2x64xf32>
    %177 = arith.mulf %168, %150 : vector<2x64xf32>
    %178 = arith.mulf %162, %170 : vector<2x64xf32>
    %179 = arith.addf %177, %178 : vector<2x64xf32>
    %180 = math.tanh %179 : vector<2x64xf32>
    %181 = arith.mulf %176, %180 : vector<2x64xf32>
    %182 = vector.extract_strided_slice %5 {offsets = [12, 0], sizes = [2, 256], strides = [1, 1]} : vector<16x256xf32> to vector<2x256xf32>
    %c0_43 = arith.constant 0 : index
    %c0_44 = arith.constant 0 : index
    %183 = vector.load %arg2[%c0_43, %c0_44] : memref<64x256xf32, #tpu.memory_space<vmem>>, vector<64x256xf32>
    %cst_45 = arith.constant dense<0.000000e+00> : vector<2x256xf32>
    %184 = tpu.matmul %181, %183, %cst_45 {dimension_numbers = #tpu.dot_dimension_numbers<[1], [0], [0], [1], [0, 0, 1, 1], [], []>} : vector<2x64xf32>, vector<64x256xf32>, vector<2x256xf32> -> vector<2x256xf32>
    %185 = arith.addf %182, %184 : vector<2x256xf32>
    %186 = vector.extract_strided_slice %185 {offsets = [0, 0], sizes = [2, 64], strides = [1, 1]} : vector<2x256xf32> to vector<2x64xf32>
    %187 = arith.negf %186 : vector<2x64xf32>
    %188 = math.exp %187 : vector<2x64xf32>
    %cst_46 = arith.constant 1.000000e+00 : f32
    %189 = vector.broadcast %cst_46 : f32 to vector<2x64xf32>
    %190 = arith.addf %189, %188 : vector<2x64xf32>
    %191 = arith.divf %189, %190 : vector<2x64xf32>
    %192 = vector.extract_strided_slice %185 {offsets = [0, 64], sizes = [2, 64], strides = [1, 1]} : vector<2x256xf32> to vector<2x64xf32>
    %193 = arith.negf %192 : vector<2x64xf32>
    %194 = math.exp %193 : vector<2x64xf32>
    %cst_47 = arith.constant 1.000000e+00 : f32
    %195 = vector.broadcast %cst_47 : f32 to vector<2x64xf32>
    %196 = arith.addf %195, %194 : vector<2x64xf32>
    %197 = arith.divf %195, %196 : vector<2x64xf32>
    %198 = vector.extract_strided_slice %185 {offsets = [0, 128], sizes = [2, 64], strides = [1, 1]} : vector<2x256xf32> to vector<2x64xf32>
    %199 = math.tanh %198 : vector<2x64xf32>
    %200 = vector.extract_strided_slice %185 {offsets = [0, 192], sizes = [2, 64], strides = [1, 1]} : vector<2x256xf32> to vector<2x64xf32>
    %201 = arith.negf %200 : vector<2x64xf32>
    %202 = math.exp %201 : vector<2x64xf32>
    %cst_48 = arith.constant 1.000000e+00 : f32
    %203 = vector.broadcast %cst_48 : f32 to vector<2x64xf32>
    %204 = arith.addf %203, %202 : vector<2x64xf32>
    %205 = arith.divf %203, %204 : vector<2x64xf32>
    %206 = arith.mulf %197, %179 : vector<2x64xf32>
    %207 = arith.mulf %191, %199 : vector<2x64xf32>
    %208 = arith.addf %206, %207 : vector<2x64xf32>
    %209 = math.tanh %208 : vector<2x64xf32>
    %210 = arith.mulf %205, %209 : vector<2x64xf32>
    %211 = vector.extract_strided_slice %5 {offsets = [14, 0], sizes = [2, 256], strides = [1, 1]} : vector<16x256xf32> to vector<2x256xf32>
    %c0_49 = arith.constant 0 : index
    %c0_50 = arith.constant 0 : index
    %212 = vector.load %arg2[%c0_49, %c0_50] : memref<64x256xf32, #tpu.memory_space<vmem>>, vector<64x256xf32>
    %cst_51 = arith.constant dense<0.000000e+00> : vector<2x256xf32>
    %213 = tpu.matmul %210, %212, %cst_51 {dimension_numbers = #tpu.dot_dimension_numbers<[1], [0], [0], [1], [0, 0, 1, 1], [], []>} : vector<2x64xf32>, vector<64x256xf32>, vector<2x256xf32> -> vector<2x256xf32>
    %214 = arith.addf %211, %213 : vector<2x256xf32>
    %215 = vector.extract_strided_slice %214 {offsets = [0, 0], sizes = [2, 64], strides = [1, 1]} : vector<2x256xf32> to vector<2x64xf32>
    %216 = arith.negf %215 : vector<2x64xf32>
    %217 = math.exp %216 : vector<2x64xf32>
    %cst_52 = arith.constant 1.000000e+00 : f32
    %218 = vector.broadcast %cst_52 : f32 to vector<2x64xf32>
    %219 = arith.addf %218, %217 : vector<2x64xf32>
    %220 = arith.divf %218, %219 : vector<2x64xf32>
    %221 = vector.extract_strided_slice %214 {offsets = [0, 64], sizes = [2, 64], strides = [1, 1]} : vector<2x256xf32> to vector<2x64xf32>
    %222 = arith.negf %221 : vector<2x64xf32>
    %223 = math.exp %222 : vector<2x64xf32>
    %cst_53 = arith.constant 1.000000e+00 : f32
    %224 = vector.broadcast %cst_53 : f32 to vector<2x64xf32>
    %225 = arith.addf %224, %223 : vector<2x64xf32>
    %226 = arith.divf %224, %225 : vector<2x64xf32>
    %227 = vector.extract_strided_slice %214 {offsets = [0, 128], sizes = [2, 64], strides = [1, 1]} : vector<2x256xf32> to vector<2x64xf32>
    %228 = math.tanh %227 : vector<2x64xf32>
    %229 = vector.extract_strided_slice %214 {offsets = [0, 192], sizes = [2, 64], strides = [1, 1]} : vector<2x256xf32> to vector<2x64xf32>
    %230 = arith.negf %229 : vector<2x64xf32>
    %231 = math.exp %230 : vector<2x64xf32>
    %cst_54 = arith.constant 1.000000e+00 : f32
    %232 = vector.broadcast %cst_54 : f32 to vector<2x64xf32>
    %233 = arith.addf %232, %231 : vector<2x64xf32>
    %234 = arith.divf %232, %233 : vector<2x64xf32>
    %235 = arith.mulf %226, %208 : vector<2x64xf32>
    %236 = arith.mulf %220, %228 : vector<2x64xf32>
    %237 = arith.addf %235, %236 : vector<2x64xf32>
    %238 = math.tanh %237 : vector<2x64xf32>
    %239 = arith.mulf %234, %238 : vector<2x64xf32>
    %c0_55 = arith.constant 0 : index
    %c0_56 = arith.constant 0 : index
    %240 = vector.load %arg4[%c0_55, %c0_56] : memref<64x128xf32, #tpu.memory_space<vmem>>, vector<64x128xf32>
    %cst_57 = arith.constant dense<0.000000e+00> : vector<2x128xf32>
    %241 = tpu.matmul %239, %240, %cst_57 {dimension_numbers = #tpu.dot_dimension_numbers<[1], [0], [0], [1], [0, 0, 1, 1], [], []>} : vector<2x64xf32>, vector<64x128xf32>, vector<2x128xf32> -> vector<2x128xf32>
    %c0_58 = arith.constant 0 : index
    %c0_59 = arith.constant 0 : index
    %242 = vector.load %arg6[%c0_58, %c0_59] : memref<1x128xf32, #tpu.memory_space<vmem>>, vector<1x128xf32>
    %243 = vector.broadcast %242 : vector<1x128xf32> to vector<2x128xf32>
    %244 = arith.addf %241, %243 : vector<2x128xf32>
    %cst_60 = arith.constant 0.000000e+00 : f32
    %245 = vector.broadcast %cst_60 : f32 to vector<1x32xf32>
    %cst_61 = arith.constant 0.000000e+00 : f32
    %246 = vector.broadcast %cst_61 : f32 to vector<1x32xf32>
    %247 = vector.extract_strided_slice %244 {offsets = [0, 0], sizes = [1, 128], strides = [1, 1]} : vector<2x128xf32> to vector<1x128xf32>
    %c0_62 = arith.constant 0 : index
    %c0_63 = arith.constant 0 : index
    %248 = vector.load %arg5[%c0_62, %c0_63] : memref<32x128xf32, #tpu.memory_space<vmem>>, vector<32x128xf32>
    %cst_64 = arith.constant dense<0.000000e+00> : vector<1x128xf32>
    %249 = tpu.matmul %245, %248, %cst_64 {dimension_numbers = #tpu.dot_dimension_numbers<[1], [0], [0], [1], [0, 0, 1, 1], [], []>} : vector<1x32xf32>, vector<32x128xf32>, vector<1x128xf32> -> vector<1x128xf32>
    %250 = arith.addf %247, %249 : vector<1x128xf32>
    %251 = vector.extract_strided_slice %250 {offsets = [0, 0], sizes = [1, 32], strides = [1, 1]} : vector<1x128xf32> to vector<1x32xf32>
    %252 = arith.negf %251 : vector<1x32xf32>
    %253 = math.exp %252 : vector<1x32xf32>
    %cst_65 = arith.constant 1.000000e+00 : f32
    %254 = vector.broadcast %cst_65 : f32 to vector<1x32xf32>
    %255 = arith.addf %254, %253 : vector<1x32xf32>
    %256 = arith.divf %254, %255 : vector<1x32xf32>
    %257 = vector.extract_strided_slice %250 {offsets = [0, 32], sizes = [1, 32], strides = [1, 1]} : vector<1x128xf32> to vector<1x32xf32>
    %258 = arith.negf %257 : vector<1x32xf32>
    %259 = math.exp %258 : vector<1x32xf32>
    %cst_66 = arith.constant 1.000000e+00 : f32
    %260 = vector.broadcast %cst_66 : f32 to vector<1x32xf32>
    %261 = arith.addf %260, %259 : vector<1x32xf32>
    %262 = arith.divf %260, %261 : vector<1x32xf32>
    %263 = vector.extract_strided_slice %250 {offsets = [0, 64], sizes = [1, 32], strides = [1, 1]} : vector<1x128xf32> to vector<1x32xf32>
    %264 = math.tanh %263 : vector<1x32xf32>
    %265 = vector.extract_strided_slice %250 {offsets = [0, 96], sizes = [1, 32], strides = [1, 1]} : vector<1x128xf32> to vector<1x32xf32>
    %266 = arith.negf %265 : vector<1x32xf32>
    %267 = math.exp %266 : vector<1x32xf32>
    %cst_67 = arith.constant 1.000000e+00 : f32
    %268 = vector.broadcast %cst_67 : f32 to vector<1x32xf32>
    %269 = arith.addf %268, %267 : vector<1x32xf32>
    %270 = arith.divf %268, %269 : vector<1x32xf32>
    %271 = arith.mulf %262, %246 : vector<1x32xf32>
    %272 = arith.mulf %256, %264 : vector<1x32xf32>
    %273 = arith.addf %271, %272 : vector<1x32xf32>
    %274 = math.tanh %273 : vector<1x32xf32>
    %275 = arith.mulf %270, %274 : vector<1x32xf32>
    %276 = vector.extract_strided_slice %244 {offsets = [1, 0], sizes = [1, 128], strides = [1, 1]} : vector<2x128xf32> to vector<1x128xf32>
    %c0_68 = arith.constant 0 : index
    %c0_69 = arith.constant 0 : index
    %277 = vector.load %arg5[%c0_68, %c0_69] : memref<32x128xf32, #tpu.memory_space<vmem>>, vector<32x128xf32>
    %cst_70 = arith.constant dense<0.000000e+00> : vector<1x128xf32>
    %278 = tpu.matmul %275, %277, %cst_70 {dimension_numbers = #tpu.dot_dimension_numbers<[1], [0], [0], [1], [0, 0, 1, 1], [], []>} : vector<1x32xf32>, vector<32x128xf32>, vector<1x128xf32> -> vector<1x128xf32>
    %279 = arith.addf %276, %278 : vector<1x128xf32>
    %280 = vector.extract_strided_slice %279 {offsets = [0, 0], sizes = [1, 32], strides = [1, 1]} : vector<1x128xf32> to vector<1x32xf32>
    %281 = arith.negf %280 : vector<1x32xf32>
    %282 = math.exp %281 : vector<1x32xf32>
    %cst_71 = arith.constant 1.000000e+00 : f32
    %283 = vector.broadcast %cst_71 : f32 to vector<1x32xf32>
    %284 = arith.addf %283, %282 : vector<1x32xf32>
    %285 = arith.divf %283, %284 : vector<1x32xf32>
    %286 = vector.extract_strided_slice %279 {offsets = [0, 32], sizes = [1, 32], strides = [1, 1]} : vector<1x128xf32> to vector<1x32xf32>
    %287 = arith.negf %286 : vector<1x32xf32>
    %288 = math.exp %287 : vector<1x32xf32>
    %cst_72 = arith.constant 1.000000e+00 : f32
    %289 = vector.broadcast %cst_72 : f32 to vector<1x32xf32>
    %290 = arith.addf %289, %288 : vector<1x32xf32>
    %291 = arith.divf %289, %290 : vector<1x32xf32>
    %292 = vector.extract_strided_slice %279 {offsets = [0, 64], sizes = [1, 32], strides = [1, 1]} : vector<1x128xf32> to vector<1x32xf32>
    %293 = math.tanh %292 : vector<1x32xf32>
    %294 = vector.extract_strided_slice %279 {offsets = [0, 96], sizes = [1, 32], strides = [1, 1]} : vector<1x128xf32> to vector<1x32xf32>
    %295 = arith.negf %294 : vector<1x32xf32>
    %296 = math.exp %295 : vector<1x32xf32>
    %cst_73 = arith.constant 1.000000e+00 : f32
    %297 = vector.broadcast %cst_73 : f32 to vector<1x32xf32>
    %298 = arith.addf %297, %296 : vector<1x32xf32>
    %299 = arith.divf %297, %298 : vector<1x32xf32>
    %300 = arith.mulf %291, %273 : vector<1x32xf32>
    %301 = arith.mulf %285, %293 : vector<1x32xf32>
    %302 = arith.addf %300, %301 : vector<1x32xf32>
    %303 = math.tanh %302 : vector<1x32xf32>
    %304 = arith.mulf %299, %303 : vector<1x32xf32>
    %c0_74 = arith.constant 0 : index
    %c0_75 = arith.constant 0 : index
    %305 = vector.load %arg7[%c0_74, %c0_75] : memref<1x32xf32, #tpu.memory_space<vmem>>, vector<1x32xf32>
    tpu.vector_store %arg7[%c0_74, %c0_75], %304 {strides = array<i32>} : memref<1x32xf32, #tpu.memory_space<vmem>>, vector<1x32xf32>,
    return
  }
}

</mosaic_0001>

<llo_original>
// kernel: encoder_forward.1
$region0: #{encoder_forward.1}
  #allocation0 [shape = 'u32[]', space=smem, size = 0x4, offset = 0x4, fixed_abs, tag = 'smem constant byte address 0x4 - core index']
  #allocation1 [shape = 'u32[144,128]{1,0:T(1,128)}', space=vmem, size = 0x12000, scoped, tag = 'internal scratch']
  %s0 = inlined_call_operand.vmem [shape: f32[16,128], index: 0, kind: input, shape index: {}]
  %s1 = inlined_call_operand.hbm [shape: f32[128,256], index: 1, kind: input, shape index: {}]
  %s2 = inlined_call_operand.hbm [shape: f32[64,256], index: 2, kind: input, shape index: {}]
  %s3 = inlined_call_operand.vmem [shape: f32[1,256], index: 3, kind: input, shape index: {}]
  %s4 = inlined_call_operand.vmem [shape: f32[64,128], index: 4, kind: input, shape index: {}]
  %s5 = inlined_call_operand.hbm [shape: f32[32,128], index: 5, kind: input, shape index: {}]
  %s6 = inlined_call_operand.vmem [shape: f32[1,128], index: 6, kind: input, shape index: {}]
  %s7 = inlined_call_operand.hbm [shape: f32[1,32], index: 7, kind: output, shape index: {}]
  %s8 = sld [smem:[#allocation0]]
  $region50: #{encoder_forward.1} parent=0
    _
  %s10 = ssub.s32 1, %s8
  %s11 = scalar_select 0, %s10, %s8
  $region1: #{encoder_forward.1} parent=0
    #allocation2 [shape = 'u8[131072]{0}', space=vmem, size = 0x20000, scoped, tag = 'input window, operand 1, single buffered']
    #allocation3 [shape = 's32[1]{0}', space=sflag, size = 0x4, scoped, tag = 'scoped memory for encoder_forward.1']
    #allocation4 [shape = 's32[1]{0}', space=sflag, size = 0x4, scoped, tag = 'scoped memory for encoder_forward.1']
    #allocation5 [shape = 'u8[65536]{0}', space=vmem, size = 0x10000, scoped, tag = 'input window, operand 2, single buffered']
    #allocation6 [shape = 's32[1]{0}', space=sflag, size = 0x4, scoped, tag = 'scoped memory for encoder_forward.1']
    #allocation7 [shape = 'u8[16384]{0}', space=vmem, size = 0x4000, scoped, tag = 'input window, operand 5, single buffered']
    #allocation8 [shape = 'u8[512]{0}', space=vmem, size = 0x400, scoped, tag = 'output window, operand 0, single buffered']
    %12 = vsyncpa [#allocation3], 0
    %13 = vsyncpa [#allocation6], 0
    %14 = vsyncpa [#allocation4], 0
    // Predicated region
    $region2: #{encoder_forward.1} parent=1 // pred_check
      _
    $region3: #{encoder_forward.1} parent=1 // pred_check_branch
      %16 = sbr.rel (0) target = $region5
    $region4: #{encoder_forward.1} parent=1 // pred_region
      _
    $region5: #{encoder_forward.1} parent=1 // pred_fallthru
      _
    // Predicated region
    $region6: #{encoder_forward.1} parent=1 // pred_check
      _
    $region7: #{encoder_forward.1} parent=1 // pred_check_branch
      %18 = sbr.rel (0) target = $region9
    $region8: #{encoder_forward.1} parent=1 // pred_region
      %s20 = ssub.s32 4096, 4096
      %21 = vsyncadd [#allocation3], %s20
      %s22 = sshll.u32 [#allocation2], 4
      %s23 = int_to_ptr.vmem [resolvable:$true] %s22
      %28 = dma.hbm_to_vmem [thread:$0]  %s1, 4096, %s23, [#allocation3], 256, 256, 16
    $region9: #{encoder_forward.1} parent=1 // pred_fallthru
      _
    // Predicated region
    $region10: #{encoder_forward.1} parent=1 // pred_check
      _
    $region11: #{encoder_forward.1} parent=1 // pred_check_branch
      %30 = sbr.rel (0) target = $region13
    $region12: #{encoder_forward.1} parent=1 // pred_region
      %s32 = ssub.s32 2048, 2048
      %33 = vsyncadd [#allocation6], %s32
      %s34 = sshll.u32 [#allocation5], 4
      %s35 = int_to_ptr.vmem [resolvable:$true] %s34
      %40 = dma.hbm_to_vmem [thread:$0]  %s2, 2048, %s35, [#allocation6], 256, 256, 16
    $region13: #{encoder_forward.1} parent=1 // pred_fallthru
      _
    // Predicated region
    $region14: #{encoder_forward.1} parent=1 // pred_check
      _
    $region15: #{encoder_forward.1} parent=1 // pred_check_branch
      %42 = sbr.rel (0) target = $region17
    $region16: #{encoder_forward.1} parent=1 // pred_region
      _
    $region17: #{encoder_forward.1} parent=1 // pred_fallthru
      _
    // Predicated region
    $region18: #{encoder_forward.1} parent=1 // pred_check
      _
    $region19: #{encoder_forward.1} parent=1 // pred_check_branch
      %44 = sbr.rel (0) target = $region21
    $region20: #{encoder_forward.1} parent=1 // pred_region
      _
    $region21: #{encoder_forward.1} parent=1 // pred_fallthru
      _
    // Predicated region
    $region22: #{encoder_forward.1} parent=1 // pred_check
      _
    $region23: #{encoder_forward.1} parent=1 // pred_check_branch
      %46 = sbr.rel (0) target = $region25
    $region24: #{encoder_forward.1} parent=1 // pred_region
      %s48 = ssub.s32 512, 512
      %49 = vsyncadd [#allocation6], %s48
      %s50 = sshll.u32 [#allocation7], 4
      %s51 = int_to_ptr.vmem [resolvable:$true] %s50
      %56 = dma.hbm_to_vmem [thread:$0]  %s5, 512, %s51, [#allocation6], 128, 128, 8
    $region25: #{encoder_forward.1} parent=1 // pred_fallthru
      _
    // Predicated region
    $region26: #{encoder_forward.1} parent=1 // pred_check
      _
    $region27: #{encoder_forward.1} parent=1 // pred_check_branch
      %58 = sbr.rel (0) target = $region29
    $region28: #{encoder_forward.1} parent=1 // pred_region
      _
    $region29: #{encoder_forward.1} parent=1 // pred_fallthru
      _
    // Predicated region
    $region30: #{encoder_forward.1} parent=1 // pred_check
      _
    $region31: #{encoder_forward.1} parent=1 // pred_check_branch
      %60 = sbr.rel (0) target = $region33
    $region32: #{encoder_forward.1} parent=1 // pred_region
      %61 = dma.done [#allocation3], 4096
    $region33: #{encoder_forward.1} parent=1 // pred_fallthru
      _
    // Predicated region
    $region34: #{encoder_forward.1} parent=1 // pred_check
      _
    $region35: #{encoder_forward.1} parent=1 // pred_check_branch
      %63 = sbr.rel (0) target = $region37
    $region36: #{encoder_forward.1} parent=1 // pred_region
      %64 = dma.done [#allocation6], 2048
    $region37: #{encoder_forward.1} parent=1 // pred_fallthru
      _
    // Predicated region
    $region38: #{encoder_forward.1} parent=1 // pred_check
      _
    $region39: #{encoder_forward.1} parent=1 // pred_check_branch
      %66 = sbr.rel (0) target = $region41
    $region40: #{encoder_forward.1} parent=1 // pred_region
      %67 = dma.done [#allocation6], 512
    $region41: #{encoder_forward.1} parent=1 // pred_fallthru
      _
    %v68 = vld [vmem:[%s0] sm:$0xff]
    %v69 = vld [vmem:[%s0 + $0x8] sm:$0xff]
    %v70 = vld [vmem:[#allocation2] sm:$0xff]
    %v71 = vld [vmem:[#allocation2 + $0x8] sm:$0xff]
    %v72 = vld [vmem:[#allocation2 + $0x10] sm:$0xff]
    %v73 = vld [vmem:[#allocation2 + $0x18] sm:$0xff]
    %v74 = vld [vmem:[#allocation2 + $0x20] sm:$0xff]
    %v75 = vld [vmem:[#allocation2 + $0x28] sm:$0xff]
    %v76 = vld [vmem:[#allocation2 + $0x30] sm:$0xff]
    %v77 = vld [vmem:[#allocation2 + $0x38] sm:$0xff]
    %v78 = vld [vmem:[#allocation2 + $0x40] sm:$0xff]
    %v79 = vld [vmem:[#allocation2 + $0x48] sm:$0xff]
    %v80 = vld [vmem:[#allocation2 + $0x50] sm:$0xff]
    %v81 = vld [vmem:[#allocation2 + $0x58] sm:$0xff]
    %v82 = vld [vmem:[#allocation2 + $0x60] sm:$0xff]
    %v83 = vld [vmem:[#allocation2 + $0x68] sm:$0xff]
    %v84 = vld [vmem:[#allocation2 + $0x70] sm:$0xff]
    %v85 = vld [vmem:[#allocation2 + $0x78] sm:$0xff]
    %v86 = vld [vmem:[#allocation2 + $0x80] sm:$0xff]
    %v87 = vld [vmem:[#allocation2 + $0x88] sm:$0xff]
    %v88 = vld [vmem:[#allocation2 + $0x90] sm:$0xff]
    %v89 = vld [vmem:[#allocation2 + $0x98] sm:$0xff]
    %v90 = vld [vmem:[#allocation2 + $0xa0] sm:$0xff]
    %v91 = vld [vmem:[#allocation2 + $0xa8] sm:$0xff]
    %v92 = vld [vmem:[#allocation2 + $0xb0] sm:$0xff]
    %v93 = vld [vmem:[#allocation2 + $0xb8] sm:$0xff]
    %v94 = vld [vmem:[#allocation2 + $0xc0] sm:$0xff]
    %v95 = vld [vmem:[#allocation2 + $0xc8] sm:$0xff]
    %v96 = vld [vmem:[#allocation2 + $0xd0] sm:$0xff]
    %v97 = vld [vmem:[#allocation2 + $0xd8] sm:$0xff]
    %v98 = vld [vmem:[#allocation2 + $0xe0] sm:$0xff]
    %v99 = vld [vmem:[#allocation2 + $0xe8] sm:$0xff]
    %v100 = vld [vmem:[#allocation2 + $0xf0] sm:$0xff]
    %v101 = vld [vmem:[#allocation2 + $0xf8] sm:$0xff]
    %v102 = vld [vmem:[%s3] sm:$0x3]
    %v104 = vlaneseq
    %v105 = vshrl.u32 %v104, 7
    %v106 = vsub.s32 0, %v105
    %v107 = vrot.slane %v102, %v106
    %v108 = vlaneseq
    %v109 = vshrl.u32 %v108, 7
    %v110 = vsub.s32 1, %v109
    %v111 = vrot.slane %v102, %v110
    %114 = vmatprep.subr.mxu0 %v71
    %115 = vmatpush1.msra.mxu0 %v70
    %116 = vmatprep.subr.mxu0 %v73
    %117 = vmatpush1.msra.mxu0 %v72
    %118 = vmatprep.subr.mxu0 %v75
    %119 = vmatpush1.msra.mxu0 %v74
    %120 = vmatprep.subr.mxu0 %v77
    %121 = vmatpush1.msra.mxu0 %v76
    %122 = vmatprep.subr.mxu0 %v79
    %123 = vmatpush1.msra.mxu0 %v78
    %124 = vmatprep.subr.mxu0 %v81
    %125 = vmatpush1.msra.mxu0 %v80
    %126 = vmatprep.subr.mxu0 %v83
    %127 = vmatpush1.msra.mxu0 %v82
    %128 = vmatprep.subr.mxu0 %v85
    %129 = vmatpush1.msra.mxu0 %v84
    %130 = vmatprep.subr.mxu0 %v87
    %131 = vmatpush1.msra.mxu0 %v86
    %132 = vmatprep.subr.mxu0 %v89
    %133 = vmatpush1.msra.mxu0 %v88
    %134 = vmatprep.subr.mxu0 %v91
    %135 = vmatpush1.msra.mxu0 %v90
    %136 = vmatprep.subr.mxu0 %v93
    %137 = vmatpush1.msra.mxu0 %v92
    %138 = vmatprep.subr.mxu0 %v95
    %139 = vmatpush1.msra.mxu0 %v94
    %140 = vmatprep.subr.mxu0 %v97
    %141 = vmatpush1.msra.mxu0 %v96
    %142 = vmatprep.subr.mxu0 %v99
    %143 = vmatpush1.msra.mxu0 %v98
    %144 = vmatprep.subr.mxu0 %v101
    %145 = vmatpush1.msra.mxu0 %v100
    %146 = vmatprep.subr.mxu0 0.0
    %147 = vmatpush1.msra.mxu0 0.0
    %148 = vmatprep.subr.mxu0 0.0
    %149 = vmatpush1.msra.mxu0 0.0
    %150 = vmatprep.subr.mxu0 0.0
    %151 = vmatpush1.msra.mxu0 0.0
    %152 = vmatprep.subr.mxu0 0.0
    %153 = vmatpush1.msra.mxu0 0.0
    %154 = vmatprep.subr.mxu0 0.0
    %155 = vmatpush1.msra.mxu0 0.0
    %156 = vmatprep.subr.mxu0 0.0
    %157 = vmatpush1.msra.mxu0 0.0
    %158 = vmatprep.subr.mxu0 0.0
    %159 = vmatpush1.msra.mxu0 0.0
    %160 = vmatprep.subr.mxu0 0.0
    %161 = vmatpush1.msra.mxu0 0.0
    %162 = vmatprep.subr.mxu0 0.0
    %163 = vmatpush1.msra.mxu0 0.0
    %164 = vmatprep.subr.mxu0 0.0
    %165 = vmatpush1.msra.mxu0 0.0
    %166 = vmatprep.subr.mxu0 0.0
    %167 = vmatpush1.msra.mxu0 0.0
    %168 = vmatprep.subr.mxu0 0.0
    %169 = vmatpush1.msra.mxu0 0.0
    %170 = vmatprep.subr.mxu0 0.0
    %171 = vmatpush1.msra.mxu0 0.0
    %172 = vmatprep.subr.mxu0 0.0
    %173 = vmatpush1.msra.mxu0 0.0
    %174 = vmatprep.subr.mxu0 0.0
    %175 = vmatpush1.msra.mxu0 0.0
    %176 = vmatprep.subr.mxu0 0.0
    %177 = vmatpush1.msra.mxu0 0.0
    %178 = vmatprep.mubr.f32.mxu0 0.0
    %179 = vmatmul.mubr.f32.gmra.mrb[0].mxu0 %v68
    %v180 = vpop.f32.mrb[0].mxu0
    %v181 = vadd.f32 %v107, %v180
    %v182 = vpop.f32.mrb[0].mxu0
    %v183 = vadd.f32 %v111, %v182
    %184 = vmatprep.mubr.f32.mxu0 0.0
    %185 = vmatmul.mubr.f32.gmra.mrb[0].mxu0 %v69
    %v186 = vpop.f32.mrb[0].mxu0
    %v187 = vadd.f32 %v107, %v186
    %v188 = vpop.f32.mrb[0].mxu0
    %v189 = vadd.f32 %v111, %v188
    %190 = vdwg.mxu0
    %v191 = vld [vmem:[#allocation5] sm:$0xff]
    %v192 = vld [vmem:[#allocation5 + $0x8] sm:$0xff]
    %v193 = vld [vmem:[#allocation5 + $0x10] sm:$0xff]
    %v194 = vld [vmem:[#allocation5 + $0x18] sm:$0xff]
    %v195 = vld [vmem:[#allocation5 + $0x20] sm:$0xff]
    %v196 = vld [vmem:[#allocation5 + $0x28] sm:$0xff]
    %v197 = vld [vmem:[#allocation5 + $0x30] sm:$0xff]
    %v198 = vld [vmem:[#allocation5 + $0x38] sm:$0xff]
    %v199 = vld [vmem:[#allocation5 + $0x40] sm:$0xff]
    %v200 = vld [vmem:[#allocation5 + $0x48] sm:$0xff]
    %v201 = vld [vmem:[#allocation5 + $0x50] sm:$0xff]
    %v202 = vld [vmem:[#allocation5 + $0x58] sm:$0xff]
    %v203 = vld [vmem:[#allocation5 + $0x60] sm:$0xff]
    %v204 = vld [vmem:[#allocation5 + $0x68] sm:$0xff]
    %v205 = vld [vmem:[#allocation5 + $0x70] sm:$0xff]
    %v206 = vld [vmem:[#allocation5 + $0x78] sm:$0xff]
    %vm207 = vcmask 523264
    %v209 = vsel %vm207, 0.0, 0
    %211 = vmatprep.subr.mxu0 %v192
    %212 = vmatpush1.msra.mxu0 %v191
    %213 = vmatprep.subr.mxu0 %v194
    %214 = vmatpush1.msra.mxu0 %v193
    %215 = vmatprep.subr.mxu0 %v196
    %216 = vmatpush1.msra.mxu0 %v195
    %217 = vmatprep.subr.mxu0 %v198
    %218 = vmatpush1.msra.mxu0 %v197
    %219 = vmatprep.subr.mxu0 %v200
    %220 = vmatpush1.msra.mxu0 %v199
    %221 = vmatprep.subr.mxu0 %v202
    %222 = vmatpush1.msra.mxu0 %v201
    %223 = vmatprep.subr.mxu0 %v204
    %224 = vmatpush1.msra.mxu0 %v203
    %225 = vmatprep.subr.mxu0 %v206
    %226 = vmatpush1.msra.mxu0 %v205
    %227 = vmatprep.subr.mxu0 0.0
    %228 = vmatpush1.msra.mxu0 0.0
    %229 = vmatprep.subr.mxu0 0.0
    %230 = vmatpush1.msra.mxu0 0.0
    %231 = vmatprep.subr.mxu0 0.0
    %232 = vmatpush1.msra.mxu0 0.0
    %233 = vmatprep.subr.mxu0 0.0
    %234 = vmatpush1.msra.mxu0 0.0
    %235 = vmatprep.subr.mxu0 0.0
    %236 = vmatpush1.msra.mxu0 0.0
    %237 = vmatprep.subr.mxu0 0.0
    %238 = vmatpush1.msra.mxu0 0.0
    %239 = vmatprep.subr.mxu0 0.0
    %240 = vmatpush1.msra.mxu0 0.0
    %241 = vmatprep.subr.mxu0 0.0
    %242 = vmatpush1.msra.mxu0 0.0
    %243 = vmatprep.subr.mxu0 0.0
    %244 = vmatpush1.msra.mxu0 0.0
    %245 = vmatprep.subr.mxu0 0.0
    %246 = vmatpush1.msra.mxu0 0.0
    %247 = vmatprep.subr.mxu0 0.0
    %248 = vmatpush1.msra.mxu0 0.0
    %249 = vmatprep.subr.mxu0 0.0
    %250 = vmatpush1.msra.mxu0 0.0
    %251 = vmatprep.subr.mxu0 0.0
    %252 = vmatpush1.msra.mxu0 0.0
    %253 = vmatprep.subr.mxu0 0.0
    %254 = vmatpush1.msra.mxu0 0.0
    %255 = vmatprep.subr.mxu0 0.0
    %256 = vmatpush1.msra.mxu0 0.0
    %257 = vmatprep.subr.mxu0 0.0
    %258 = vmatpush1.msra.mxu0 0.0
    %259 = vmatprep.subr.mxu0 0.0
    %260 = vmatpush1.msra.mxu0 0.0
    %261 = vmatprep.subr.mxu0 0.0
    %262 = vmatpush1.msra.mxu0 0.0
    %263 = vmatprep.subr.mxu0 0.0
    %264 = vmatpush1.msra.mxu0 0.0
    %265 = vmatprep.subr.mxu0 0.0
    %266 = vmatpush1.msra.mxu0 0.0
    %267 = vmatprep.subr.mxu0 0.0
    %268 = vmatpush1.msra.mxu0 0.0
    %269 = vmatprep.subr.mxu0 0.0
    %270 = vmatpush1.msra.mxu0 0.0
    %271 = vmatprep.subr.mxu0 0.0
    %272 = vmatpush1.msra.mxu0 0.0
    %273 = vmatprep.subr.mxu0 0.0
    %274 = vmatpush1.msra.mxu0 0.0
    %275 = vmatprep.mubr.f32.mxu0 0.0
    %276 = vmatmul.mubr.f32.gmra.mrb[0].mxu0 %v209
    %v277 = vpop.f32.mrb[0].mxu0
    %v278 = vadd.f32 0.0, %v277
    %v279 = vpop.f32.mrb[0].mxu0
    %v280 = vadd.f32 0.0, %v279
    %281 = vdwg.mxu0
    %v282 = vadd.f32 %v181, %v278
    %v283 = vadd.f32 %v183, %v280
    %v284 = vxor.u32 %v282, 2147483648
    %v285 = vmul.f32 %v284, 1.442695
    %v286 = vpow.pop %v285
    %v287 = vadd.f32 %v286, 1.0
    %v288 = vrcp.pop %v287
    %v289 = vmul.f32 1.0, %v288
    %v290 = vtanh.pop %v283
    %v291 = vxor.u32 %v283, 2147483648
    %v292 = vmul.f32 %v291, 1.442695
    %v293 = vpow.pop %v292
    %v294 = vadd.f32 %v293, 1.0
    %v295 = vrcp.pop %v294
    %v296 = vmul.f32 1.0, %v295
    %v297 = vmul.f32 %v289, 0.0
    %v298 = vmul.f32 %v289, %v290
    %300 = vrot.lane.b32.xlu0 %v298, 64
    %v301 = vpop.permute.xlu0 %300
    %v303 = vadd.f32 %v297, %v301
    %v304 = vtanh.pop %v303
    %v305 = vmul.f32 %v296, %v304
    %307 = vrot.lane.b32.xlu0 %v305, 64
    %v308 = vpop.permute.xlu0 %307
    %v309 = vsel %vm207, %v308, 0
    %311 = vmatprep.subr.mxu0 %v192
    %312 = vmatpush1.msra.mxu0 %v191
    %313 = vmatprep.subr.mxu0 %v194
    %314 = vmatpush1.msra.mxu0 %v193
    %315 = vmatprep.subr.mxu0 %v196
    %316 = vmatpush1.msra.mxu0 %v195
    %317 = vmatprep.subr.mxu0 %v198
    %318 = vmatpush1.msra.mxu0 %v197
    %319 = vmatprep.subr.mxu0 %v200
    %320 = vmatpush1.msra.mxu0 %v199
    %321 = vmatprep.subr.mxu0 %v202
    %322 = vmatpush1.msra.mxu0 %v201
    %323 = vmatprep.subr.mxu0 %v204
    %324 = vmatpush1.msra.mxu0 %v203
    %325 = vmatprep.subr.mxu0 %v206
    %326 = vmatpush1.msra.mxu0 %v205
    %327 = vmatprep.subr.mxu0 0.0
    %328 = vmatpush1.msra.mxu0 0.0
    %329 = vmatprep.subr.mxu0 0.0
    %330 = vmatpush1.msra.mxu0 0.0
    %331 = vmatprep.subr.mxu0 0.0
    %332 = vmatpush1.msra.mxu0 0.0
    %333 = vmatprep.subr.mxu0 0.0
    %334 = vmatpush1.msra.mxu0 0.0
    %335 = vmatprep.subr.mxu0 0.0
    %336 = vmatpush1.msra.mxu0 0.0
    %337 = vmatprep.subr.mxu0 0.0
    %338 = vmatpush1.msra.mxu0 0.0
    %339 = vmatprep.subr.mxu0 0.0
    %340 = vmatpush1.msra.mxu0 0.0
    %341 = vmatprep.subr.mxu0 0.0
    %342 = vmatpush1.msra.mxu0 0.0
    %343 = vmatprep.subr.mxu0 0.0
    %344 = vmatpush1.msra.mxu0 0.0
    %345 = vmatprep.subr.mxu0 0.0
    %346 = vmatpush1.msra.mxu0 0.0
    %347 = vmatprep.subr.mxu0 0.0
    %348 = vmatpush1.msra.mxu0 0.0
    %349 = vmatprep.subr.mxu0 0.0
    %350 = vmatpush1.msra.mxu0 0.0
    %351 = vmatprep.subr.mxu0 0.0
    %352 = vmatpush1.msra.mxu0 0.0
    %353 = vmatprep.subr.mxu0 0.0
    %354 = vmatpush1.msra.mxu0 0.0
    %355 = vmatprep.subr.mxu0 0.0
    %356 = vmatpush1.msra.mxu0 0.0
    %357 = vmatprep.subr.mxu0 0.0
    %358 = vmatpush1.msra.mxu0 0.0
    %359 = vmatprep.subr.mxu0 0.0
    %360 = vmatpush1.msra.mxu0 0.0
    %361 = vmatprep.subr.mxu0 0.0
    %362 = vmatpush1.msra.mxu0 0.0
    %363 = vmatprep.subr.mxu0 0.0
    %364 = vmatpush1.msra.mxu0 0.0
    %365 = vmatprep.subr.mxu0 0.0
    %366 = vmatpush1.msra.mxu0 0.0
    %367 = vmatprep.subr.mxu0 0.0
    %368 = vmatpush1.msra.mxu0 0.0
    %369 = vmatprep.subr.mxu0 0.0
    %370 = vmatpush1.msra.mxu0 0.0
    %371 = vmatprep.subr.mxu0 0.0
    %372 = vmatpush1.msra.mxu0 0.0
    %373 = vmatprep.subr.mxu0 0.0
    %374 = vmatpush1.msra.mxu0 0.0
    %375 = vmatprep.mubr.f32.mxu0 0.0
    %376 = vmatmul.mubr.f32.gmra.mrb[0].mxu0 %v309
    %v377 = vpop.f32.mrb[0].mxu0
    %v378 = vadd.f32 0.0, %v377
    %v379 = vpop.f32.mrb[0].mxu0
    %v380 = vadd.f32 0.0, %v379
    %381 = vdwg.mxu0
    %v384 = vrot.slane %v378, 6
    %v385 = vrot.slane %v380, 6
    %v388 = vadd.f32 %v181, %v384
    %v389 = vadd.f32 %v183, %v385
    %v390 = vxor.u32 %v388, 2147483648
    %v391 = vmul.f32 %v390, 1.442695
    %v392 = vpow.pop %v391
    %v393 = vadd.f32 %v392, 1.0
    %v394 = vrcp.pop %v393
    %v395 = vmul.f32 1.0, %v394
    %v396 = vtanh.pop %v389
    %v397 = vxor.u32 %v389, 2147483648
    %v398 = vmul.f32 %v397, 1.442695
    %v399 = vpow.pop %v398
    %v400 = vadd.f32 %v399, 1.0
    %v401 = vrcp.pop %v400
    %v402 = vmul.f32 1.0, %v401
    %v404 = vrot.slane %v303, 6
    %v406 = vmul.f32 %v395, %v404
    %v407 = vmul.f32 %v395, %v396
    %409 = vrot.lane.b32.xlu0 %v407, 64
    %v410 = vpop.permute.xlu0 %409
    %v412 = vadd.f32 %v406, %v410
    %v413 = vtanh.pop %v412
    %v414 = vmul.f32 %v402, %v413
    %v416 = vrot.slane %v414, 2
    %417 = vrot.lane.b32.xlu0 %v416, 64
    %v418 = vpop.permute.xlu0 %417
    %v419 = vsel %vm207, %v418, 0
    %421 = vmatprep.subr.mxu0 %v192
    %422 = vmatpush1.msra.mxu0 %v191
    %423 = vmatprep.subr.mxu0 %v194
    %424 = vmatpush1.msra.mxu0 %v193
    %425 = vmatprep.subr.mxu0 %v196
    %426 = vmatpush1.msra.mxu0 %v195
    %427 = vmatprep.subr.mxu0 %v198
    %428 = vmatpush1.msra.mxu0 %v197
    %429 = vmatprep.subr.mxu0 %v200
    %430 = vmatpush1.msra.mxu0 %v199
    %431 = vmatprep.subr.mxu0 %v202
    %432 = vmatpush1.msra.mxu0 %v201
    %433 = vmatprep.subr.mxu0 %v204
    %434 = vmatpush1.msra.mxu0 %v203
    %435 = vmatprep.subr.mxu0 %v206
    %436 = vmatpush1.msra.mxu0 %v205
    %437 = vmatprep.subr.mxu0 0.0
    %438 = vmatpush1.msra.mxu0 0.0
    %439 = vmatprep.subr.mxu0 0.0
    %440 = vmatpush1.msra.mxu0 0.0
    %441 = vmatprep.subr.mxu0 0.0
    %442 = vmatpush1.msra.mxu0 0.0
    %443 = vmatprep.subr.mxu0 0.0
    %444 = vmatpush1.msra.mxu0 0.0
    %445 = vmatprep.subr.mxu0 0.0
    %446 = vmatpush1.msra.mxu0 0.0
    %447 = vmatprep.subr.mxu0 0.0
    %448 = vmatpush1.msra.mxu0 0.0
    %449 = vmatprep.subr.mxu0 0.0
    %450 = vmatpush1.msra.mxu0 0.0
    %451 = vmatprep.subr.mxu0 0.0
    %452 = vmatpush1.msra.mxu0 0.0
    %453 = vmatprep.subr.mxu0 0.0
    %454 = vmatpush1.msra.mxu0 0.0
    %455 = vmatprep.subr.mxu0 0.0
    %456 = vmatpush1.msra.mxu0 0.0
    %457 = vmatprep.subr.mxu0 0.0
    %458 = vmatpush1.msra.mxu0 0.0
    %459 = vmatprep.subr.mxu0 0.0
    %460 = vmatpush1.msra.mxu0 0.0
    %461 = vmatprep.subr.mxu0 0.0
    %462 = vmatpush1.msra.mxu0 0.0
    %463 = vmatprep.subr.mxu0 0.0
    %464 = vmatpush1.msra.mxu0 0.0
    %465 = vmatprep.subr.mxu0 0.0
    %466 = vmatpush1.msra.mxu0 0.0
    %467 = vmatprep.subr.mxu0 0.0
    %468 = vmatpush1.msra.mxu0 0.0
    %469 = vmatprep.subr.mxu0 0.0
    %470 = vmatpush1.msra.mxu0 0.0
    %471 = vmatprep.subr.mxu0 0.0
    %472 = vmatpush1.msra.mxu0 0.0
    %473 = vmatprep.subr.mxu0 0.0
    %474 = vmatpush1.msra.mxu0 0.0
    %475 = vmatprep.subr.mxu0 0.0
    %476 = vmatpush1.msra.mxu0 0.0
    %477 = vmatprep.subr.mxu0 0.0
    %478 = vmatpush1.msra.mxu0 0.0
    %479 = vmatprep.subr.mxu0 0.0
    %480 = vmatpush1.msra.mxu0 0.0
    %481 = vmatprep.subr.mxu0 0.0
    %482 = vmatpush1.msra.mxu0 0.0
    %483 = vmatprep.subr.mxu0 0.0
    %484 = vmatpush1.msra.mxu0 0.0
    %485 = vmatprep.mubr.f32.mxu0 0.0
    %486 = vmatmul.mubr.f32.gmra.mrb[0].mxu0 %v419
    %v487 = vpop.f32.mrb[0].mxu0
    %v488 = vadd.f32 0.0, %v487
    %v489 = vpop.f32.mrb[0].mxu0
    %v490 = vadd.f32 0.0, %v489
    %491 = vdwg.mxu0
    %v494 = vrot.slane %v488, 4
    %v495 = vrot.slane %v490, 4
    %v498 = vadd.f32 %v181, %v494
    %v499 = vadd.f32 %v183, %v495
    %v500 = vxor.u32 %v498, 2147483648
    %v501 = vmul.f32 %v500, 1.442695
    %v502 = vpow.pop %v501
    %v503 = vadd.f32 %v502, 1.0
    %v504 = vrcp.pop %v503
    %v505 = vmul.f32 1.0, %v504
    %v506 = vtanh.pop %v499
    %v507 = vxor.u32 %v499, 2147483648
    %v508 = vmul.f32 %v507, 1.442695
    %v509 = vpow.pop %v508
    %v510 = vadd.f32 %v509, 1.0
    %v511 = vrcp.pop %v510
    %v512 = vmul.f32 1.0, %v511
    %v514 = vrot.slane %v412, 6
    %v516 = vmul.f32 %v505, %v514
    %v517 = vmul.f32 %v505, %v506
    %519 = vrot.lane.b32.xlu0 %v517, 64
    %v520 = vpop.permute.xlu0 %519
    %v522 = vadd.f32 %v516, %v520
    %v523 = vtanh.pop %v522
    %v524 = vmul.f32 %v512, %v523
    %v526 = vrot.slane %v524, 4
    %527 = vrot.lane.b32.xlu0 %v526, 64
    %v528 = vpop.permute.xlu0 %527
    %v529 = vsel %vm207, %v528, 0
    %531 = vmatprep.subr.mxu0 %v192
    %532 = vmatpush1.msra.mxu0 %v191
    %533 = vmatprep.subr.mxu0 %v194
    %534 = vmatpush1.msra.mxu0 %v193
    %535 = vmatprep.subr.mxu0 %v196
    %536 = vmatpush1.msra.mxu0 %v195
    %537 = vmatprep.subr.mxu0 %v198
    %538 = vmatpush1.msra.mxu0 %v197
    %539 = vmatprep.subr.mxu0 %v200
    %540 = vmatpush1.msra.mxu0 %v199
    %541 = vmatprep.subr.mxu0 %v202
    %542 = vmatpush1.msra.mxu0 %v201
    %543 = vmatprep.subr.mxu0 %v204
    %544 = vmatpush1.msra.mxu0 %v203
    %545 = vmatprep.subr.mxu0 %v206
    %546 = vmatpush1.msra.mxu0 %v205
    %547 = vmatprep.subr.mxu0 0.0
    %548 = vmatpush1.msra.mxu0 0.0
    %549 = vmatprep.subr.mxu0 0.0
    %550 = vmatpush1.msra.mxu0 0.0
    %551 = vmatprep.subr.mxu0 0.0
    %552 = vmatpush1.msra.mxu0 0.0
    %553 = vmatprep.subr.mxu0 0.0
    %554 = vmatpush1.msra.mxu0 0.0
    %555 = vmatprep.subr.mxu0 0.0
    %556 = vmatpush1.msra.mxu0 0.0
    %557 = vmatprep.subr.mxu0 0.0
    %558 = vmatpush1.msra.mxu0 0.0
    %559 = vmatprep.subr.mxu0 0.0
    %560 = vmatpush1.msra.mxu0 0.0
    %561 = vmatprep.subr.mxu0 0.0
    %562 = vmatpush1.msra.mxu0 0.0
    %563 = vmatprep.subr.mxu0 0.0
    %564 = vmatpush1.msra.mxu0 0.0
    %565 = vmatprep.subr.mxu0 0.0
    %566 = vmatpush1.msra.mxu0 0.0
    %567 = vmatprep.subr.mxu0 0.0
    %568 = vmatpush1.msra.mxu0 0.0
    %569 = vmatprep.subr.mxu0 0.0
    %570 = vmatpush1.msra.mxu0 0.0
    %571 = vmatprep.subr.mxu0 0.0
    %572 = vmatpush1.msra.mxu0 0.0
    %573 = vmatprep.subr.mxu0 0.0
    %574 = vmatpush1.msra.mxu0 0.0
    %575 = vmatprep.subr.mxu0 0.0
    %576 = vmatpush1.msra.mxu0 0.0
    %577 = vmatprep.subr.mxu0 0.0
    %578 = vmatpush1.msra.mxu0 0.0
    %579 = vmatprep.subr.mxu0 0.0
    %580 = vmatpush1.msra.mxu0 0.0
    %581 = vmatprep.subr.mxu0 0.0
    %582 = vmatpush1.msra.mxu0 0.0
    %583 = vmatprep.subr.mxu0 0.0
    %584 = vmatpush1.msra.mxu0 0.0
    %585 = vmatprep.subr.mxu0 0.0
    %586 = vmatpush1.msra.mxu0 0.0
    %587 = vmatprep.subr.mxu0 0.0
    %588 = vmatpush1.msra.mxu0 0.0
    %589 = vmatprep.subr.mxu0 0.0
    %590 = vmatpush1.msra.mxu0 0.0
    %591 = vmatprep.subr.mxu0 0.0
    %592 = vmatpush1.msra.mxu0 0.0
    %593 = vmatprep.subr.mxu0 0.0
    %594 = vmatpush1.msra.mxu0 0.0
    %595 = vmatprep.mubr.f32.mxu0 0.0
    %596 = vmatmul.mubr.f32.gmra.mrb[0].mxu0 %v529
    %v597 = vpop.f32.mrb[0].mxu0
    %v598 = vadd.f32 0.0, %v597
    %v599 = vpop.f32.mrb[0].mxu0
    %v600 = vadd.f32 0.0, %v599
    %601 = vdwg.mxu0
    %v604 = vrot.slane %v598, 2
    %v605 = vrot.slane %v600, 2
    %v608 = vadd.f32 %v181, %v604
    %v609 = vadd.f32 %v183, %v605
    %v610 = vxor.u32 %v608, 2147483648
    %v611 = vmul.f32 %v610, 1.442695
    %v612 = vpow.pop %v611
    %v613 = vadd.f32 %v612, 1.0
    %v614 = vrcp.pop %v613
    %v615 = vmul.f32 1.0, %v614
    %v616 = vtanh.pop %v609
    %v617 = vxor.u32 %v609, 2147483648
    %v618 = vmul.f32 %v617, 1.442695
    %v619 = vpow.pop %v618
    %v620 = vadd.f32 %v619, 1.0
    %v621 = vrcp.pop %v620
    %v622 = vmul.f32 1.0, %v621
    %v624 = vrot.slane %v522, 6
    %v626 = vmul.f32 %v615, %v624
    %v627 = vmul.f32 %v615, %v616
    %629 = vrot.lane.b32.xlu0 %v627, 64
    %v630 = vpop.permute.xlu0 %629
    %v632 = vadd.f32 %v626, %v630
    %v633 = vtanh.pop %v632
    %v634 = vmul.f32 %v622, %v633
    %v636 = vrot.slane %v634, 6
    %637 = vrot.lane.b32.xlu0 %v636, 64
    %v638 = vpop.permute.xlu0 %637
    %v639 = vsel %vm207, %v638, 0
    %641 = vmatprep.subr.mxu0 %v192
    %642 = vmatpush1.msra.mxu0 %v191
    %643 = vmatprep.subr.mxu0 %v194
    %644 = vmatpush1.msra.mxu0 %v193
    %645 = vmatprep.subr.mxu0 %v196
    %646 = vmatpush1.msra.mxu0 %v195
    %647 = vmatprep.subr.mxu0 %v198
    %648 = vmatpush1.msra.mxu0 %v197
    %649 = vmatprep.subr.mxu0 %v200
    %650 = vmatpush1.msra.mxu0 %v199
    %651 = vmatprep.subr.mxu0 %v202
    %652 = vmatpush1.msra.mxu0 %v201
    %653 = vmatprep.subr.mxu0 %v204
    %654 = vmatpush1.msra.mxu0 %v203
    %655 = vmatprep.subr.mxu0 %v206
    %656 = vmatpush1.msra.mxu0 %v205
    %657 = vmatprep.subr.mxu0 0.0
    %658 = vmatpush1.msra.mxu0 0.0
    %659 = vmatprep.subr.mxu0 0.0
    %660 = vmatpush1.msra.mxu0 0.0
    %661 = vmatprep.subr.mxu0 0.0
    %662 = vmatpush1.msra.mxu0 0.0
    %663 = vmatprep.subr.mxu0 0.0
    %664 = vmatpush1.msra.mxu0 0.0
    %665 = vmatprep.subr.mxu0 0.0
    %666 = vmatpush1.msra.mxu0 0.0
    %667 = vmatprep.subr.mxu0 0.0
    %668 = vmatpush1.msra.mxu0 0.0
    %669 = vmatprep.subr.mxu0 0.0
    %670 = vmatpush1.msra.mxu0 0.0
    %671 = vmatprep.subr.mxu0 0.0
    %672 = vmatpush1.msra.mxu0 0.0
    %673 = vmatprep.subr.mxu0 0.0
    %674 = vmatpush1.msra.mxu0 0.0
    %675 = vmatprep.subr.mxu0 0.0
    %676 = vmatpush1.msra.mxu0 0.0
    %677 = vmatprep.subr.mxu0 0.0
    %678 = vmatpush1.msra.mxu0 0.0
    %679 = vmatprep.subr.mxu0 0.0
    %680 = vmatpush1.msra.mxu0 0.0
    %681 = vmatprep.subr.mxu0 0.0
    %682 = vmatpush1.msra.mxu0 0.0
    %683 = vmatprep.subr.mxu0 0.0
    %684 = vmatpush1.msra.mxu0 0.0
    %685 = vmatprep.subr.mxu0 0.0
    %686 = vmatpush1.msra.mxu0 0.0
    %687 = vmatprep.subr.mxu0 0.0
    %688 = vmatpush1.msra.mxu0 0.0
    %689 = vmatprep.subr.mxu0 0.0
    %690 = vmatpush1.msra.mxu0 0.0
    %691 = vmatprep.subr.mxu0 0.0
    %692 = vmatpush1.msra.mxu0 0.0
    %693 = vmatprep.subr.mxu0 0.0
    %694 = vmatpush1.msra.mxu0 0.0
    %695 = vmatprep.subr.mxu0 0.0
    %696 = vmatpush1.msra.mxu0 0.0
    %697 = vmatprep.subr.mxu0 0.0
    %698 = vmatpush1.msra.mxu0 0.0
    %699 = vmatprep.subr.mxu0 0.0
    %700 = vmatpush1.msra.mxu0 0.0
    %701 = vmatprep.subr.mxu0 0.0
    %702 = vmatpush1.msra.mxu0 0.0
    %703 = vmatprep.subr.mxu0 0.0
    %704 = vmatpush1.msra.mxu0 0.0
    %705 = vmatprep.mubr.f32.mxu0 0.0
    %706 = vmatmul.mubr.f32.gmra.mrb[0].mxu0 %v639
    %v707 = vpop.f32.mrb[0].mxu0
    %v708 = vadd.f32 0.0, %v707
    %v709 = vpop.f32.mrb[0].mxu0
    %v710 = vadd.f32 0.0, %v709
    %711 = vdwg.mxu0
    %v712 = vadd.f32 %v187, %v708
    %v713 = vadd.f32 %v189, %v710
    %v714 = vxor.u32 %v712, 2147483648
    %v715 = vmul.f32 %v714, 1.442695
    %v716 = vpow.pop %v715
    %v717 = vadd.f32 %v716, 1.0
    %v718 = vrcp.pop %v717
    %v719 = vmul.f32 1.0, %v718
    %v720 = vtanh.pop %v713
    %v721 = vxor.u32 %v713, 2147483648
    %v722 = vmul.f32 %v721, 1.442695
    %v723 = vpow.pop %v722
    %v724 = vadd.f32 %v723, 1.0
    %v725 = vrcp.pop %v724
    %v726 = vmul.f32 1.0, %v725
    %v728 = vrot.slane %v632, 6
    %v730 = vmul.f32 %v719, %v728
    %v731 = vmul.f32 %v719, %v720
    %733 = vrot.lane.b32.xlu0 %v731, 64
    %v734 = vpop.permute.xlu0 %733
    %v736 = vadd.f32 %v730, %v734
    %v737 = vtanh.pop %v736
    %v738 = vmul.f32 %v726, %v737
    %740 = vrot.lane.b32.xlu0 %v738, 64
    %v741 = vpop.permute.xlu0 %740
    %v742 = vsel %vm207, %v741, 0
    %744 = vmatprep.subr.mxu0 %v192
    %745 = vmatpush1.msra.mxu0 %v191
    %746 = vmatprep.subr.mxu0 %v194
    %747 = vmatpush1.msra.mxu0 %v193
    %748 = vmatprep.subr.mxu0 %v196
    %749 = vmatpush1.msra.mxu0 %v195
    %750 = vmatprep.subr.mxu0 %v198
    %751 = vmatpush1.msra.mxu0 %v197
    %752 = vmatprep.subr.mxu0 %v200
    %753 = vmatpush1.msra.mxu0 %v199
    %754 = vmatprep.subr.mxu0 %v202
    %755 = vmatpush1.msra.mxu0 %v201
    %756 = vmatprep.subr.mxu0 %v204
    %757 = vmatpush1.msra.mxu0 %v203
    %758 = vmatprep.subr.mxu0 %v206
    %759 = vmatpush1.msra.mxu0 %v205
    %760 = vmatprep.subr.mxu0 0.0
    %761 = vmatpush1.msra.mxu0 0.0
    %762 = vmatprep.subr.mxu0 0.0
    %763 = vmatpush1.msra.mxu0 0.0
    %764 = vmatprep.subr.mxu0 0.0
    %765 = vmatpush1.msra.mxu0 0.0
    %766 = vmatprep.subr.mxu0 0.0
    %767 = vmatpush1.msra.mxu0 0.0
    %768 = vmatprep.subr.mxu0 0.0
    %769 = vmatpush1.msra.mxu0 0.0
    %770 = vmatprep.subr.mxu0 0.0
    %771 = vmatpush1.msra.mxu0 0.0
    %772 = vmatprep.subr.mxu0 0.0
    %773 = vmatpush1.msra.mxu0 0.0
    %774 = vmatprep.subr.mxu0 0.0
    %775 = vmatpush1.msra.mxu0 0.0
    %776 = vmatprep.subr.mxu0 0.0
    %777 = vmatpush1.msra.mxu0 0.0
    %778 = vmatprep.subr.mxu0 0.0
    %779 = vmatpush1.msra.mxu0 0.0
    %780 = vmatprep.subr.mxu0 0.0
    %781 = vmatpush1.msra.mxu0 0.0
    %782 = vmatprep.subr.mxu0 0.0
    %783 = vmatpush1.msra.mxu0 0.0
    %784 = vmatprep.subr.mxu0 0.0
    %785 = vmatpush1.msra.mxu0 0.0
    %786 = vmatprep.subr.mxu0 0.0
    %787 = vmatpush1.msra.mxu0 0.0
    %788 = vmatprep.subr.mxu0 0.0
    %789 = vmatpush1.msra.mxu0 0.0
    %790 = vmatprep.subr.mxu0 0.0
    %791 = vmatpush1.msra.mxu0 0.0
    %792 = vmatprep.subr.mxu0 0.0
    %793 = vmatpush1.msra.mxu0 0.0
    %794 = vmatprep.subr.mxu0 0.0
    %795 = vmatpush1.msra.mxu0 0.0
    %796 = vmatprep.subr.mxu0 0.0
    %797 = vmatpush1.msra.mxu0 0.0
    %798 = vmatprep.subr.mxu0 0.0
    %799 = vmatpush1.msra.mxu0 0.0
    %800 = vmatprep.subr.mxu0 0.0
    %801 = vmatpush1.msra.mxu0 0.0
    %802 = vmatprep.subr.mxu0 0.0
    %803 = vmatpush1.msra.mxu0 0.0
    %804 = vmatprep.subr.mxu0 0.0
    %805 = vmatpush1.msra.mxu0 0.0
    %806 = vmatprep.subr.mxu0 0.0
    %807 = vmatpush1.msra.mxu0 0.0
    %808 = vmatprep.mubr.f32.mxu0 0.0
    %809 = vmatmul.mubr.f32.gmra.mrb[0].mxu0 %v742
    %v810 = vpop.f32.mrb[0].mxu0
    %v811 = vadd.f32 0.0, %v810
    %v812 = vpop.f32.mrb[0].mxu0
    %v813 = vadd.f32 0.0, %v812
    %814 = vdwg.mxu0
    %v817 = vrot.slane %v811, 6
    %v818 = vrot.slane %v813, 6
    %v821 = vadd.f32 %v187, %v817
    %v822 = vadd.f32 %v189, %v818
    %v823 = vxor.u32 %v821, 2147483648
    %v824 = vmul.f32 %v823, 1.442695
    %v825 = vpow.pop %v824
    %v826 = vadd.f32 %v825, 1.0
    %v827 = vrcp.pop %v826
    %v828 = vmul.f32 1.0, %v827
    %v829 = vtanh.pop %v822
    %v830 = vxor.u32 %v822, 2147483648
    %v831 = vmul.f32 %v830, 1.442695
    %v832 = vpow.pop %v831
    %v833 = vadd.f32 %v832, 1.0
    %v834 = vrcp.pop %v833
    %v835 = vmul.f32 1.0, %v834
    %v837 = vrot.slane %v736, 6
    %v839 = vmul.f32 %v828, %v837
    %v840 = vmul.f32 %v828, %v829
    %842 = vrot.lane.b32.xlu0 %v840, 64
    %v843 = vpop.permute.xlu0 %842
    %v845 = vadd.f32 %v839, %v843
    %v846 = vtanh.pop %v845
    %v847 = vmul.f32 %v835, %v846
    %v849 = vrot.slane %v847, 2
    %850 = vrot.lane.b32.xlu0 %v849, 64
    %v851 = vpop.permute.xlu0 %850
    %v852 = vsel %vm207, %v851, 0
    %854 = vmatprep.subr.mxu0 %v192
    %855 = vmatpush1.msra.mxu0 %v191
    %856 = vmatprep.subr.mxu0 %v194
    %857 = vmatpush1.msra.mxu0 %v193
    %858 = vmatprep.subr.mxu0 %v196
    %859 = vmatpush1.msra.mxu0 %v195
    %860 = vmatprep.subr.mxu0 %v198
    %861 = vmatpush1.msra.mxu0 %v197
    %862 = vmatprep.subr.mxu0 %v200
    %863 = vmatpush1.msra.mxu0 %v199
    %864 = vmatprep.subr.mxu0 %v202
    %865 = vmatpush1.msra.mxu0 %v201
    %866 = vmatprep.subr.mxu0 %v204
    %867 = vmatpush1.msra.mxu0 %v203
    %868 = vmatprep.subr.mxu0 %v206
    %869 = vmatpush1.msra.mxu0 %v205
    %870 = vmatprep.subr.mxu0 0.0
    %871 = vmatpush1.msra.mxu0 0.0
    %872 = vmatprep.subr.mxu0 0.0
    %873 = vmatpush1.msra.mxu0 0.0
    %874 = vmatprep.subr.mxu0 0.0
    %875 = vmatpush1.msra.mxu0 0.0
    %876 = vmatprep.subr.mxu0 0.0
    %877 = vmatpush1.msra.mxu0 0.0
    %878 = vmatprep.subr.mxu0 0.0
    %879 = vmatpush1.msra.mxu0 0.0
    %880 = vmatprep.subr.mxu0 0.0
    %881 = vmatpush1.msra.mxu0 0.0
    %882 = vmatprep.subr.mxu0 0.0
    %883 = vmatpush1.msra.mxu0 0.0
    %884 = vmatprep.subr.mxu0 0.0
    %885 = vmatpush1.msra.mxu0 0.0
    %886 = vmatprep.subr.mxu0 0.0
    %887 = vmatpush1.msra.mxu0 0.0
    %888 = vmatprep.subr.mxu0 0.0
    %889 = vmatpush1.msra.mxu0 0.0
    %890 = vmatprep.subr.mxu0 0.0
    %891 = vmatpush1.msra.mxu0 0.0
    %892 = vmatprep.subr.mxu0 0.0
    %893 = vmatpush1.msra.mxu0 0.0
    %894 = vmatprep.subr.mxu0 0.0
    %895 = vmatpush1.msra.mxu0 0.0
    %896 = vmatprep.subr.mxu0 0.0
    %897 = vmatpush1.msra.mxu0 0.0
    %898 = vmatprep.subr.mxu0 0.0
    %899 = vmatpush1.msra.mxu0 0.0
    %900 = vmatprep.subr.mxu0 0.0
    %901 = vmatpush1.msra.mxu0 0.0
    %902 = vmatprep.subr.mxu0 0.0
    %903 = vmatpush1.msra.mxu0 0.0
    %904 = vmatprep.subr.mxu0 0.0
    %905 = vmatpush1.msra.mxu0 0.0
    %906 = vmatprep.subr.mxu0 0.0
    %907 = vmatpush1.msra.mxu0 0.0
    %908 = vmatprep.subr.mxu0 0.0
    %909 = vmatpush1.msra.mxu0 0.0
    %910 = vmatprep.subr.mxu0 0.0
    %911 = vmatpush1.msra.mxu0 0.0
    %912 = vmatprep.subr.mxu0 0.0
    %913 = vmatpush1.msra.mxu0 0.0
    %914 = vmatprep.subr.mxu0 0.0
    %915 = vmatpush1.msra.mxu0 0.0
    %916 = vmatprep.subr.mxu0 0.0
    %917 = vmatpush1.msra.mxu0 0.0
    %918 = vmatprep.mubr.f32.mxu0 0.0
    %919 = vmatmul.mubr.f32.gmra.mrb[0].mxu0 %v852
    %v920 = vpop.f32.mrb[0].mxu0
    %v921 = vadd.f32 0.0, %v920
    %v922 = vpop.f32.mrb[0].mxu0
    %v923 = vadd.f32 0.0, %v922
    %924 = vdwg.mxu0
    %v927 = vrot.slane %v921, 4
    %v928 = vrot.slane %v923, 4
    %v931 = vadd.f32 %v187, %v927
    %v932 = vadd.f32 %v189, %v928
    %v933 = vxor.u32 %v931, 2147483648
    %v934 = vmul.f32 %v933, 1.442695
    %v935 = vpow.pop %v934
    %v936 = vadd.f32 %v935, 1.0
    %v937 = vrcp.pop %v936
    %v938 = vmul.f32 1.0, %v937
    %v939 = vtanh.pop %v932
    %v940 = vxor.u32 %v932, 2147483648
    %v941 = vmul.f32 %v940, 1.442695
    %v942 = vpow.pop %v941
    %v943 = vadd.f32 %v942, 1.0
    %v944 = vrcp.pop %v943
    %v945 = vmul.f32 1.0, %v944
    %v947 = vrot.slane %v845, 6
    %v949 = vmul.f32 %v938, %v947
    %v950 = vmul.f32 %v938, %v939
    %952 = vrot.lane.b32.xlu0 %v950, 64
    %v953 = vpop.permute.xlu0 %952
    %v955 = vadd.f32 %v949, %v953
    %v956 = vtanh.pop %v955
    %v957 = vmul.f32 %v945, %v956
    %v959 = vrot.slane %v957, 4
    %960 = vrot.lane.b32.xlu0 %v959, 64
    %v961 = vpop.permute.xlu0 %960
    %v962 = vsel %vm207, %v961, 0
    %964 = vmatprep.subr.mxu0 %v192
    %965 = vmatpush1.msra.mxu0 %v191
    %966 = vmatprep.subr.mxu0 %v194
    %967 = vmatpush1.msra.mxu0 %v193
    %968 = vmatprep.subr.mxu0 %v196
    %969 = vmatpush1.msra.mxu0 %v195
    %970 = vmatprep.subr.mxu0 %v198
    %971 = vmatpush1.msra.mxu0 %v197
    %972 = vmatprep.subr.mxu0 %v200
    %973 = vmatpush1.msra.mxu0 %v199
    %974 = vmatprep.subr.mxu0 %v202
    %975 = vmatpush1.msra.mxu0 %v201
    %976 = vmatprep.subr.mxu0 %v204
    %977 = vmatpush1.msra.mxu0 %v203
    %978 = vmatprep.subr.mxu0 %v206
    %979 = vmatpush1.msra.mxu0 %v205
    %980 = vmatprep.subr.mxu0 0.0
    %981 = vmatpush1.msra.mxu0 0.0
    %982 = vmatprep.subr.mxu0 0.0
    %983 = vmatpush1.msra.mxu0 0.0
    %984 = vmatprep.subr.mxu0 0.0
    %985 = vmatpush1.msra.mxu0 0.0
    %986 = vmatprep.subr.mxu0 0.0
    %987 = vmatpush1.msra.mxu0 0.0
    %988 = vmatprep.subr.mxu0 0.0
    %989 = vmatpush1.msra.mxu0 0.0
    %990 = vmatprep.subr.mxu0 0.0
    %991 = vmatpush1.msra.mxu0 0.0
    %992 = vmatprep.subr.mxu0 0.0
    %993 = vmatpush1.msra.mxu0 0.0
    %994 = vmatprep.subr.mxu0 0.0
    %995 = vmatpush1.msra.mxu0 0.0
    %996 = vmatprep.subr.mxu0 0.0
    %997 = vmatpush1.msra.mxu0 0.0
    %998 = vmatprep.subr.mxu0 0.0
    %999 = vmatpush1.msra.mxu0 0.0
    %1000 = vmatprep.subr.mxu0 0.0
    %1001 = vmatpush1.msra.mxu0 0.0
    %1002 = vmatprep.subr.mxu0 0.0
    %1003 = vmatpush1.msra.mxu0 0.0
    %1004 = vmatprep.subr.mxu0 0.0
    %1005 = vmatpush1.msra.mxu0 0.0
    %1006 = vmatprep.subr.mxu0 0.0
    %1007 = vmatpush1.msra.mxu0 0.0
    %1008 = vmatprep.subr.mxu0 0.0
    %1009 = vmatpush1.msra.mxu0 0.0
    %1010 = vmatprep.subr.mxu0 0.0
    %1011 = vmatpush1.msra.mxu0 0.0
    %1012 = vmatprep.subr.mxu0 0.0
    %1013 = vmatpush1.msra.mxu0 0.0
    %1014 = vmatprep.subr.mxu0 0.0
    %1015 = vmatpush1.msra.mxu0 0.0
    %1016 = vmatprep.subr.mxu0 0.0
    %1017 = vmatpush1.msra.mxu0 0.0
    %1018 = vmatprep.subr.mxu0 0.0
    %1019 = vmatpush1.msra.mxu0 0.0
    %1020 = vmatprep.subr.mxu0 0.0
    %1021 = vmatpush1.msra.mxu0 0.0
    %1022 = vmatprep.subr.mxu0 0.0
    %1023 = vmatpush1.msra.mxu0 0.0
    %1024 = vmatprep.subr.mxu0 0.0
    %1025 = vmatpush1.msra.mxu0 0.0
    %1026 = vmatprep.subr.mxu0 0.0
    %1027 = vmatpush1.msra.mxu0 0.0
    %1028 = vmatprep.mubr.f32.mxu0 0.0
    %1029 = vmatmul.mubr.f32.gmra.mrb[0].mxu0 %v962
    %v1030 = vpop.f32.mrb[0].mxu0
    %v1031 = vadd.f32 0.0, %v1030
    %v1032 = vpop.f32.mrb[0].mxu0
    %v1033 = vadd.f32 0.0, %v1032
    %1034 = vdwg.mxu0
    %v1037 = vrot.slane %v1031, 2
    %v1038 = vrot.slane %v1033, 2
    %v1041 = vadd.f32 %v187, %v1037
    %v1042 = vadd.f32 %v189, %v1038
    %v1043 = vxor.u32 %v1041, 2147483648
    %v1044 = vmul.f32 %v1043, 1.442695
    %v1045 = vpow.pop %v1044
    %v1046 = vadd.f32 %v1045, 1.0
    %v1047 = vrcp.pop %v1046
    %v1048 = vmul.f32 1.0, %v1047
    %v1049 = vtanh.pop %v1042
    %v1050 = vxor.u32 %v1042, 2147483648
    %v1051 = vmul.f32 %v1050, 1.442695
    %v1052 = vpow.pop %v1051
    %v1053 = vadd.f32 %v1052, 1.0
    %v1054 = vrcp.pop %v1053
    %v1055 = vmul.f32 1.0, %v1054
    %v1057 = vrot.slane %v955, 6
    %v1059 = vmul.f32 %v1048, %v1057
    %v1060 = vmul.f32 %v1048, %v1049
    %1062 = vrot.lane.b32.xlu0 %v1060, 64
    %v1063 = vpop.permute.xlu0 %1062
    %v1065 = vadd.f32 %v1059, %v1063
    %v1066 = vtanh.pop %v1065
    %v1067 = vmul.f32 %v1055, %v1066
    %v1068 = vld [vmem:[%s4] sm:$0xff]
    %v1069 = vld [vmem:[%s4 + $0x8] sm:$0xff]
    %v1070 = vld [vmem:[%s4 + $0x10] sm:$0xff]
    %v1071 = vld [vmem:[%s4 + $0x18] sm:$0xff]
    %v1072 = vld [vmem:[%s4 + $0x20] sm:$0xff]
    %v1073 = vld [vmem:[%s4 + $0x28] sm:$0xff]
    %v1074 = vld [vmem:[%s4 + $0x30] sm:$0xff]
    %v1075 = vld [vmem:[%s4 + $0x38] sm:$0xff]
    %v1076 = vld [vmem:[%s6] sm:$0x1]
    %v1078 = vlaneseq
    %v1079 = vshrl.u32 %v1078, 7
    %v1080 = vsub.s32 0, %v1079
    %v1081 = vrot.slane %v1076, %v1080
    %v1084 = vrot.slane %v1067, 6
    %1085 = vrot.lane.b32.xlu0 %v1084, 64
    %v1086 = vpop.permute.xlu0 %1085
    %v1087 = vsel %vm207, %v1086, 0
    %1089 = vmatprep.subr.mxu0 0.0
    %1090 = vmatpush1.msra.mxu0 %v1068
    %1091 = vmatprep.subr.mxu0 0.0
    %1092 = vmatpush1.msra.mxu0 %v1069
    %1093 = vmatprep.subr.mxu0 0.0
    %1094 = vmatpush1.msra.mxu0 %v1070
    %1095 = vmatprep.subr.mxu0 0.0
    %1096 = vmatpush1.msra.mxu0 %v1071
    %1097 = vmatprep.subr.mxu0 0.0
    %1098 = vmatpush1.msra.mxu0 %v1072
    %1099 = vmatprep.subr.mxu0 0.0
    %1100 = vmatpush1.msra.mxu0 %v1073
    %1101 = vmatprep.subr.mxu0 0.0
    %1102 = vmatpush1.msra.mxu0 %v1074
    %1103 = vmatprep.subr.mxu0 0.0
    %1104 = vmatpush1.msra.mxu0 %v1075
    %1105 = vmatprep.subr.mxu0 0.0
    %1106 = vmatpush1.msra.mxu0 0.0
    %1107 = vmatprep.subr.mxu0 0.0
    %1108 = vmatpush1.msra.mxu0 0.0
    %1109 = vmatprep.subr.mxu0 0.0
    %1110 = vmatpush1.msra.mxu0 0.0
    %1111 = vmatprep.subr.mxu0 0.0
    %1112 = vmatpush1.msra.mxu0 0.0
    %1113 = vmatprep.subr.mxu0 0.0
    %1114 = vmatpush1.msra.mxu0 0.0
    %1115 = vmatprep.subr.mxu0 0.0
    %1116 = vmatpush1.msra.mxu0 0.0
    %1117 = vmatprep.subr.mxu0 0.0
    %1118 = vmatpush1.msra.mxu0 0.0
    %1119 = vmatprep.subr.mxu0 0.0
    %1120 = vmatpush1.msra.mxu0 0.0
    %1121 = vmatprep.subr.mxu0 0.0
    %1122 = vmatpush1.msra.mxu0 0.0
    %1123 = vmatprep.subr.mxu0 0.0
    %1124 = vmatpush1.msra.mxu0 0.0
    %1125 = vmatprep.subr.mxu0 0.0
    %1126 = vmatpush1.msra.mxu0 0.0
    %1127 = vmatprep.subr.mxu0 0.0
    %1128 = vmatpush1.msra.mxu0 0.0
    %1129 = vmatprep.subr.mxu0 0.0
    %1130 = vmatpush1.msra.mxu0 0.0
    %1131 = vmatprep.subr.mxu0 0.0
    %1132 = vmatpush1.msra.mxu0 0.0
    %1133 = vmatprep.subr.mxu0 0.0
    %1134 = vmatpush1.msra.mxu0 0.0
    %1135 = vmatprep.subr.mxu0 0.0
    %1136 = vmatpush1.msra.mxu0 0.0
    %1137 = vmatprep.subr.mxu0 0.0
    %1138 = vmatpush1.msra.mxu0 0.0
    %1139 = vmatprep.subr.mxu0 0.0
    %1140 = vmatpush1.msra.mxu0 0.0
    %1141 = vmatprep.subr.mxu0 0.0
    %1142 = vmatpush1.msra.mxu0 0.0
    %1143 = vmatprep.subr.mxu0 0.0
    %1144 = vmatpush1.msra.mxu0 0.0
    %1145 = vmatprep.subr.mxu0 0.0
    %1146 = vmatpush1.msra.mxu0 0.0
    %1147 = vmatprep.subr.mxu0 0.0
    %1148 = vmatpush1.msra.mxu0 0.0
    %1149 = vmatprep.subr.mxu0 0.0
    %1150 = vmatpush1.msra.mxu0 0.0
    %1151 = vmatprep.subr.mxu0 0.0
    %1152 = vmatpush1.msra.mxu0 0.0
    %1153 = vmatprep.mubr.f32.mxu0 0.0
    %1154 = vmatmul.mubr.f32.gmra.mrb[0].mxu0 %v1087
    %v1155 = vpop.f32.mrb[0].mxu0
    %v1156 = vadd.f32 %v1081, %v1155
    %v1157 = vpop.f32.mrb[0].mxu0
    %1158 = vdwg.mxu0
    %v1159 = vld [vmem:[#allocation7] sm:$0xff]
    %v1160 = vld [vmem:[#allocation7 + $0x8] sm:$0xff]
    %v1161 = vld [vmem:[#allocation7 + $0x10] sm:$0xff]
    %v1162 = vld [vmem:[#allocation7 + $0x18] sm:$0xff]
    %vm1163 = vcmask 261120
    %v1164 = vsel %vm1163, 0.0, 0
    %1166 = vmatprep.subr.mxu0 0.0
    %1167 = vmatpush1.msra.mxu0 %v1159
    %1168 = vmatprep.subr.mxu0 0.0
    %1169 = vmatpush1.msra.mxu0 %v1160
    %1170 = vmatprep.subr.mxu0 0.0
    %1171 = vmatpush1.msra.mxu0 %v1161
    %1172 = vmatprep.subr.mxu0 0.0
    %1173 = vmatpush1.msra.mxu0 %v1162
    %1174 = vmatprep.subr.mxu0 0.0
    %1175 = vmatpush1.msra.mxu0 0.0
    %1176 = vmatprep.subr.mxu0 0.0
    %1177 = vmatpush1.msra.mxu0 0.0
    %1178 = vmatprep.subr.mxu0 0.0
    %1179 = vmatpush1.msra.mxu0 0.0
    %1180 = vmatprep.subr.mxu0 0.0
    %1181 = vmatpush1.msra.mxu0 0.0
    %1182 = vmatprep.subr.mxu0 0.0
    %1183 = vmatpush1.msra.mxu0 0.0
    %1184 = vmatprep.subr.mxu0 0.0
    %1185 = vmatpush1.msra.mxu0 0.0
    %1186 = vmatprep.subr.mxu0 0.0
    %1187 = vmatpush1.msra.mxu0 0.0
    %1188 = vmatprep.subr.mxu0 0.0
    %1189 = vmatpush1.msra.mxu0 0.0
    %1190 = vmatprep.subr.mxu0 0.0
    %1191 = vmatpush1.msra.mxu0 0.0
    %1192 = vmatprep.subr.mxu0 0.0
    %1193 = vmatpush1.msra.mxu0 0.0
    %1194 = vmatprep.subr.mxu0 0.0
    %1195 = vmatpush1.msra.mxu0 0.0
    %1196 = vmatprep.subr.mxu0 0.0
    %1197 = vmatpush1.msra.mxu0 0.0
    %1198 = vmatprep.subr.mxu0 0.0
    %1199 = vmatpush1.msra.mxu0 0.0
    %1200 = vmatprep.subr.mxu0 0.0
    %1201 = vmatpush1.msra.mxu0 0.0
    %1202 = vmatprep.subr.mxu0 0.0
    %1203 = vmatpush1.msra.mxu0 0.0
    %1204 = vmatprep.subr.mxu0 0.0
    %1205 = vmatpush1.msra.mxu0 0.0
    %1206 = vmatprep.subr.mxu0 0.0
    %1207 = vmatpush1.msra.mxu0 0.0
    %1208 = vmatprep.subr.mxu0 0.0
    %1209 = vmatpush1.msra.mxu0 0.0
    %1210 = vmatprep.subr.mxu0 0.0
    %1211 = vmatpush1.msra.mxu0 0.0
    %1212 = vmatprep.subr.mxu0 0.0
    %1213 = vmatpush1.msra.mxu0 0.0
    %1214 = vmatprep.subr.mxu0 0.0
    %1215 = vmatpush1.msra.mxu0 0.0
    %1216 = vmatprep.subr.mxu0 0.0
    %1217 = vmatpush1.msra.mxu0 0.0
    %1218 = vmatprep.subr.mxu0 0.0
    %1219 = vmatpush1.msra.mxu0 0.0
    %1220 = vmatprep.subr.mxu0 0.0
    %1221 = vmatpush1.msra.mxu0 0.0
    %1222 = vmatprep.subr.mxu0 0.0
    %1223 = vmatpush1.msra.mxu0 0.0
    %1224 = vmatprep.subr.mxu0 0.0
    %1225 = vmatpush1.msra.mxu0 0.0
    %1226 = vmatprep.subr.mxu0 0.0
    %1227 = vmatpush1.msra.mxu0 0.0
    %1228 = vmatprep.subr.mxu0 0.0
    %1229 = vmatpush1.msra.mxu0 0.0
    %1230 = vmatprep.mubr.f32.mxu0 0.0
    %1231 = vmatmul.mubr.f32.gmra.mrb[0].mxu0 %v1164
    %v1232 = vpop.f32.mrb[0].mxu0
    %v1233 = vadd.f32 0.0, %v1232
    %v1234 = vpop.f32.mrb[0].mxu0
    %1235 = vdwg.mxu0
    %v1236 = vadd.f32 %v1156, %v1233
    %v1237 = vxor.u32 %v1236, 2147483648
    %v1238 = vmul.f32 %v1237, 1.442695
    %v1239 = vpow.pop %v1238
    %v1240 = vadd.f32 %v1239, 1.0
    %v1241 = vrcp.pop %v1240
    %v1242 = vmul.f32 1.0, %v1241
    %v1243 = vtanh.pop %v1236
    %v1244 = vmul.f32 %v1242, 0.0
    %1246 = vrot.lane.b32.xlu0 %v1243, 64
    %v1247 = vpop.permute.xlu0 %1246
    %v1249 = vmul.f32 %v1242, %v1247
    %1251 = vrot.lane.b32.xlu0 %v1249, 32
    %v1252 = vpop.permute.xlu0 %1251
    %v1254 = vadd.f32 %v1244, %v1252
    %v1255 = vtanh.pop %v1254
    %1257 = vrot.lane.b32.xlu0 %v1255, 64
    %v1258 = vpop.permute.xlu0 %1257
    %v1260 = vmul.f32 %v1242, %v1258
    %1262 = vrot.lane.b32.xlu0 %v1260, 32
    %v1263 = vpop.permute.xlu0 %1262
    %v1264 = vsel %vm1163, %v1263, 0
    %1266 = vmatprep.subr.mxu0 0.0
    %1267 = vmatpush1.msra.mxu0 %v1159
    %1268 = vmatprep.subr.mxu0 0.0
    %1269 = vmatpush1.msra.mxu0 %v1160
    %1270 = vmatprep.subr.mxu0 0.0
    %1271 = vmatpush1.msra.mxu0 %v1161
    %1272 = vmatprep.subr.mxu0 0.0
    %1273 = vmatpush1.msra.mxu0 %v1162
    %1274 = vmatprep.subr.mxu0 0.0
    %1275 = vmatpush1.msra.mxu0 0.0
    %1276 = vmatprep.subr.mxu0 0.0
    %1277 = vmatpush1.msra.mxu0 0.0
    %1278 = vmatprep.subr.mxu0 0.0
    %1279 = vmatpush1.msra.mxu0 0.0
    %1280 = vmatprep.subr.mxu0 0.0
    %1281 = vmatpush1.msra.mxu0 0.0
    %1282 = vmatprep.subr.mxu0 0.0
    %1283 = vmatpush1.msra.mxu0 0.0
    %1284 = vmatprep.subr.mxu0 0.0
    %1285 = vmatpush1.msra.mxu0 0.0
    %1286 = vmatprep.subr.mxu0 0.0
    %1287 = vmatpush1.msra.mxu0 0.0
    %1288 = vmatprep.subr.mxu0 0.0
    %1289 = vmatpush1.msra.mxu0 0.0
    %1290 = vmatprep.subr.mxu0 0.0
    %1291 = vmatpush1.msra.mxu0 0.0
    %1292 = vmatprep.subr.mxu0 0.0
    %1293 = vmatpush1.msra.mxu0 0.0
    %1294 = vmatprep.subr.mxu0 0.0
    %1295 = vmatpush1.msra.mxu0 0.0
    %1296 = vmatprep.subr.mxu0 0.0
    %1297 = vmatpush1.msra.mxu0 0.0
    %1298 = vmatprep.subr.mxu0 0.0
    %1299 = vmatpush1.msra.mxu0 0.0
    %1300 = vmatprep.subr.mxu0 0.0
    %1301 = vmatpush1.msra.mxu0 0.0
    %1302 = vmatprep.subr.mxu0 0.0
    %1303 = vmatpush1.msra.mxu0 0.0
    %1304 = vmatprep.subr.mxu0 0.0
    %1305 = vmatpush1.msra.mxu0 0.0
    %1306 = vmatprep.subr.mxu0 0.0
    %1307 = vmatpush1.msra.mxu0 0.0
    %1308 = vmatprep.subr.mxu0 0.0
    %1309 = vmatpush1.msra.mxu0 0.0
    %1310 = vmatprep.subr.mxu0 0.0
    %1311 = vmatpush1.msra.mxu0 0.0
    %1312 = vmatprep.subr.mxu0 0.0
    %1313 = vmatpush1.msra.mxu0 0.0
    %1314 = vmatprep.subr.mxu0 0.0
    %1315 = vmatpush1.msra.mxu0 0.0
    %1316 = vmatprep.subr.mxu0 0.0
    %1317 = vmatpush1.msra.mxu0 0.0
    %1318 = vmatprep.subr.mxu0 0.0
    %1319 = vmatpush1.msra.mxu0 0.0
    %1320 = vmatprep.subr.mxu0 0.0
    %1321 = vmatpush1.msra.mxu0 0.0
    %1322 = vmatprep.subr.mxu0 0.0
    %1323 = vmatpush1.msra.mxu0 0.0
    %1324 = vmatprep.subr.mxu0 0.0
    %1325 = vmatpush1.msra.mxu0 0.0
    %1326 = vmatprep.subr.mxu0 0.0
    %1327 = vmatpush1.msra.mxu0 0.0
    %1328 = vmatprep.subr.mxu0 0.0
    %1329 = vmatpush1.msra.mxu0 0.0
    %1330 = vmatprep.mubr.f32.mxu0 0.0
    %1331 = vmatmul.mubr.f32.gmra.mrb[0].mxu0 %v1264
    %v1332 = vpop.f32.mrb[0].mxu0
    %v1333 = vadd.f32 0.0, %v1332
    %v1334 = vpop.f32.mrb[0].mxu0
    %1335 = vdwg.mxu0
    %v1337 = vrot.slane %v1333, 7
    %v1339 = vadd.f32 %v1156, %v1337
    %v1340 = vxor.u32 %v1339, 2147483648
    %v1341 = vmul.f32 %v1340, 1.442695
    %v1342 = vpow.pop %v1341
    %v1343 = vadd.f32 %v1342, 1.0
    %v1344 = vrcp.pop %v1343
    %v1345 = vmul.f32 1.0, %v1344
    %v1346 = vtanh.pop %v1339
    %v1348 = vrot.slane %v1254, 7
    %v1350 = vmul.f32 %v1345, %v1348
    %1352 = vrot.lane.b32.xlu0 %v1346, 64
    %v1353 = vpop.permute.xlu0 %1352
    %v1355 = vmul.f32 %v1345, %v1353
    %1357 = vrot.lane.b32.xlu0 %v1355, 32
    %v1358 = vpop.permute.xlu0 %1357
    %v1360 = vadd.f32 %v1350, %v1358
    %v1361 = vtanh.pop %v1360
    %1363 = vrot.lane.b32.xlu0 %v1361, 64
    %v1364 = vpop.permute.xlu0 %1363
    %v1366 = vmul.f32 %v1345, %v1364
    %1368 = vrot.lane.b32.xlu0 %v1366, 32
    %v1369 = vpop.permute.xlu0 %1368
    %vm1371 = vcmask 254977
    %1372 = vst.msk [vmem:[#allocation8 - $0x1] sm:$0x2] %vm1371, %v1369
    // Predicated region
    $region42: #{encoder_forward.1} parent=1 // pred_check
      _
    $region43: #{encoder_forward.1} parent=1 // pred_check_branch
      %1374 = sbr.rel (0) target = $region45
    $region44: #{encoder_forward.1} parent=1 // pred_region
      %s1376 = ssub.s32 16, 16
      %1377 = vsyncadd [#allocation4], %s1376
      %s1379 = sshll.u32 [#allocation8], 4
      %s1380 = int_to_ptr.vmem [resolvable:$true] %s1379
      %1382 = dma.vmem_to_hbm [thread:$0]  %s1380, 16, %s7, [#allocation4]
    $region45: #{encoder_forward.1} parent=1 // pred_fallthru
      _
    // Predicated region
    $region46: #{encoder_forward.1} parent=1 // pred_check
      _
    $region47: #{encoder_forward.1} parent=1 // pred_check_branch
      %1384 = sbr.rel (0) target = $region49
    $region48: #{encoder_forward.1} parent=1 // pred_region
      %1385 = dma.done [#allocation4], 16
    $region49: #{encoder_forward.1} parent=1 // pred_fallthru
      _
    %1386 = vsyncpa [#allocation3], 1
    %1387 = vsyncpa [#allocation6], 1
    %1388 = vsyncpa [#allocation4], 1

</llo_original>
